<compile_context>
chip_gen: v5e
topology: v5e:2x2
jax: 0.10.0
libtpu: 0.0.40
codegen_flags: <defaults>
</compile_context>

<pallas_src>
import math
import functools

import jax
import jax.numpy as jnp
from jax.experimental import pallas as pl
from jax.experimental.pallas import tpu as pltpu

# Plain Python float -> lowered as a literal (a jnp.float32(...) array here is what
# caused the "captures constants" tracing failure).
NEG_INF = -1e30


def _attn_agg_kernel(q_ref, k_ref, v_ref, qm_ref, cm_ref, w_ref, b_ref, o_ref,
                     *, h, d_k, h_pad, scale):
    """One grid step = one aggregating layer x one batch tile (all in VMEM)."""
    bt, nq, d_model = q_ref.shape
    nk = k_ref.shape[1]
    hdk = h * d_k

    q = q_ref[...]            # (bt, nq, d_model)
    k = k_ref[...]            # (bt, nk, d_model)
    v = v_ref[...]            # (bt, nk, d_model)
    qmask = qm_ref[...]       # (bt, nq, 1)  1.0 == padded query position
    cmask = cm_ref[...]       # (bt, 1, nk)  1.0 == padded key/value position

    # packed per-layer weights: rows [Wq (hdk) ; Wk (hdk) ; Wvo (h_pad, fc_o folded in)]
    wq = w_ref[0, 0:hdk, :]                       # (hdk, d_model)
    wk = w_ref[0, hdk:2 * hdk, :]                 # (hdk, d_model)
    wvo = w_ref[0, 2 * hdk:2 * hdk + h_pad, :]    # (h_pad, d_model)

    bq = b_ref[0, 0:1, 0:hdk]                     # (1, hdk)
    bk = b_ref[0, 1:2, 0:hdk]                     # (1, hdk)
    bvo = b_ref[0, 2:3, 0:h_pad]                  # (1, h_pad)
    bo = b_ref[0, 3:4, 0:1]                       # (1, 1)

    # ---- one big projection matmul per operand (batch folded into the M dim) ----
    qf = q.reshape(bt * nq, d_model)
    kf = k.reshape(bt * nk, d_model)
    vf = v.reshape(bt * nk, d_model)

    Q = jnp.einsum("md,kd->mk", qf, wq, preferred_element_type=jnp.float32) + bq    # (bt*nq, hdk)
    K = jnp.einsum("md,kd->mk", kf, wk, preferred_element_type=jnp.float32) + bk    # (bt*nk, hdk)
    VS = jnp.einsum("md,hd->mh", vf, wvo, preferred_element_type=jnp.float32) + bvo  # (bt*nk, h_pad)

    Qb = Q.reshape(bt, nq, hdk)
    Kb = K.reshape(bt, nk, hdk)
    VSb = VS.reshape(bt, nk, h_pad)

    # additive key-padding bias, hoisted out of the head loop (computed once)
    key_bias = jnp.where(cmask > 0.5, NEG_INF, 0.0)           # (bt, 1, nk)

    # ---- per-head attention (static unroll, batched over the batch tile) ----
    score = None
    for i in range(h):
        Qi = Qb[:, :, i * d_k:(i + 1) * d_k]                  # (bt, nq, d_k)
        Ki = Kb[:, :, i * d_k:(i + 1) * d_k]                  # (bt, nk, d_k)
        VSi = VSb[:, :, i:i + 1]                              # (bt, nk, 1) == V_i @ Wo_i^T

        s = jnp.einsum("bqd,bkd->bqk", Qi, Ki,
                       preferred_element_type=jnp.float32) * scale + key_bias
        p = jnp.exp(s - jnp.max(s, axis=-1, keepdims=True))   # unnormalized softmax
        denom = jnp.sum(p, axis=-1, keepdims=True)            # (bt, nq, 1)
        num = jnp.einsum("bqk,bkh->bqh", p, VSi,
                         preferred_element_type=jnp.float32)  # (bt, nq, 1)
        si = num * pl.reciprocal(denom, approx=False)         # normalize after the dot
        score = si if score is None else score + si

    score = score + bo                                        # fc_o bias

    # ---- aggregation over the query axis (outer module logic) ----
    score = jnp.where(qmask > 0.5, NEG_INF, score)
    sc = jnp.exp(score - jnp.max(score, axis=1, keepdims=True))
    att_q = sc * pl.reciprocal(jnp.sum(sc, axis=1, keepdims=True), approx=False)  # (bt, nq, 1)

    validf = 1.0 - qmask                                      # 1.0 == valid query
    den = jnp.sum(validf, axis=1, keepdims=True)              # (bt, 1, 1)
    wagg = att_q * validf * pl.reciprocal(den, approx=False)  # (bt, nq, 1)

    agg = jnp.sum(q * wagg, axis=1, keepdims=True)            # (bt, 1, d_model)
    o_ref[...] = agg.reshape(o_ref.shape)                     # (1, bt, d_model) lane-dense store


def _pack_params(params, *, h, d_k, d_v, h_pad):
    """Fold fc_o into fc_v and concatenate per-layer weights/biases into 2 tensors."""
    wq, wk, wv, wo = params["wq"], params["wk"], params["wv"], params["wo"]
    bq, bk, bv, bo = params["bq"], params["bk"], params["bv"], params["bo"]
    N, hdk, d_model = wq.shape

    # score_i = att_i @ (V_i @ wo_i) ; V_i @ wo_i = v @ (wo_i @ Wv_i)^T + wo_i . bv_i
    wo_h = wo.reshape(N, h, d_v)
    wv_h = wv.reshape(N, h, d_v, d_model)
    wvo = jnp.einsum("nhv,nhvd->nhd", wo_h, wv_h)                       # (N, h, d_model)
    bvo = jnp.einsum("nhv,nhv->nh", wo_h, bv.reshape(N, h, d_v))        # (N, h)

    # pad folded-V rows to a sublane multiple so in-kernel row slices stay aligned
    wvo_p = jnp.zeros((N, h_pad, d_model), jnp.float32).at[:, :h, :].set(wvo)
    w_all = jnp.concatenate([wq, wk, wvo_p], axis=1)                    # (N, 2*hdk + h_pad, dm)

    bias_cols = max(hdk, h_pad)
    b_all = jnp.zeros((N, 4, bias_cols), jnp.float32)
    b_all = b_all.at[:, 0, :hdk].set(bq[:, 0, :])
    b_all = b_all.at[:, 1, :hdk].set(bk[:, 0, :])
    b_all = b_all.at[:, 2, :h].set(bvo)
    b_all = b_all.at[:, 3, 0].set(bo[:, 0, 0])
    return w_all, b_all


def multi_head_attention_aggregation(queries, cross_keys, cross_values,
                                     attention_mask, cross_attention_mask,
                                     params, *, h, d_k, d_v, b_tile=None):
    """queries: (B, nq, d_model); cross_keys/values: (B, nk, d_model);
       attention_mask: (B, nq) bool (True = pad); cross_attention_mask: (B, nk) bool."""
    B, nq, d_model = queries.shape
    nk = cross_keys.shape[1]
    N = params["wq"].shape[0]
    hdk = h * d_k
    h_pad = ((h + 7) // 8) * 8

    b_tile = B if b_tile is None else b_tile
    assert B % b_tile == 0, "b_tile must divide batch"
    assert b_tile == B or b_tile % 8 == 0, "partial batch tile must be sublane-aligned"

    w_all, b_all = _pack_params(params, h=h, d_k=d_k, d_v=d_v, h_pad=h_pad)
    rows = 2 * hdk + h_pad
    bias_cols = b_all.shape[-1]

    qmask = attention_mask.astype(jnp.float32).reshape(B, nq, 1)
    cmask = cross_attention_mask.astype(jnp.float32).reshape(B, 1, nk)

    kernel = functools.partial(_attn_agg_kernel, h=h, d_k=d_k, h_pad=h_pad,
                               scale=float(1.0 / math.sqrt(d_k)))

    def data_idx(n, b):      # batch-tiled operands (constant in n -> fetched once per tile)
        return (b, 0, 0)

    def layer_idx(n, b):     # per-layer packed weights / biases
        return (n, 0, 0)

    out = pl.pallas_call(
        kernel,
        out_shape=jax.ShapeDtypeStruct((N, B, d_model), jnp.float32),
        grid_spec=pltpu.PrefetchScalarGridSpec(
            num_scalar_prefetch=0,
            grid=(N, pl.cdiv(B, b_tile)),
            in_specs=[
                pl.BlockSpec((b_tile, nq, d_model), data_idx),   # queries
                pl.BlockSpec((b_tile, nk, d_model), data_idx),   # cross_keys
                pl.BlockSpec((b_tile, nk, d_model), data_idx),   # cross_values
                pl.BlockSpec((b_tile, nq, 1), data_idx),         # query pad mask
                pl.BlockSpec((b_tile, 1, nk), data_idx),         # key/value pad mask
                pl.BlockSpec((1, rows, d_model), layer_idx),     # packed [Wq;Wk;Wvo]
                pl.BlockSpec((1, 4, bias_cols), layer_idx),      # packed [bq;bk;bvo;bo]
            ],
            out_specs=pl.BlockSpec((1, b_tile, d_model), lambda n, b: (n, b, 0)),
        ),
        compiler_params=pltpu.CompilerParams(
            dimension_semantics=("parallel", "parallel")),
    )(queries, cross_keys, cross_values, qmask, cmask, w_all, b_all)

    # (N, B, d_model) -> (B, N, d_model), matching torch.cat(new_out, 1)
    return out.transpose(1, 0, 2)


def init_params(key, N, d_model, d_k, d_v, h):
    """Deterministic xavier-uniform weights, zero biases (matches init_weights())."""
    ks = jax.random.split(key, 4 * N)

    def xavier(k, out_f, in_f):
        bound = math.sqrt(6.0 / (in_f + out_f))
        return jax.random.uniform(k, (out_f, in_f), jnp.float32, -bound, bound)

    wq = jnp.stack([xavier(ks[4 * i + 0], h * d_k, d_model) for i in range(N)])
    wk = jnp.stack([xavier(ks[4 * i + 1], h * d_k, d_model) for i in range(N)])
    wv = jnp.stack([xavier(ks[4 * i + 2], h * d_v, d_model) for i in range(N)])
    wo = jnp.stack([xavier(ks[4 * i + 3], 1, h * d_v) for i in range(N)])   # (N, 1, h*d_v)
    return dict(
        wq=wq, bq=jnp.zeros((N, 1, h * d_k), jnp.float32),
        wk=wk, bk=jnp.zeros((N, 1, h * d_k), jnp.float32),
        wv=wv, bv=jnp.zeros((N, 1, h * d_v), jnp.float32),
        wo=wo, bo=jnp.zeros((N, 1, 1), jnp.float32),
    )


def reference(queries, keys, values, qmask_bool, cmask_bool, params, h, d_k, d_v):
    """Pure-JAX re-implementation of the PyTorch forward (for verification)."""
    B, nq, d_model = queries.shape
    nk = keys.shape[1]
    N = params["wq"].shape[0]
    qm = qmask_bool[:, :, None]
    qmf = 1.0 - qm.astype(jnp.float32)
    outs = []
    for n in range(N):
        Wq, bq = params["wq"][n], params["bq"][n, 0]
        Wk, bk = params["wk"][n], params["bk"][n, 0]
        Wv, bv = params["wv"][n], params["bv"][n, 0]
        Wo, bo = params["wo"][n], params["bo"][n, 0, 0]
        Q = queries @ Wq.T + bq
        K = keys @ Wk.T + bk
        V = values @ Wv.T + bv
        Qh = Q.reshape(B, nq, h, d_k).transpose(0, 2, 1, 3)
        Kh = K.reshape(B, nk, h, d_k).transpose(0, 2, 1, 3)
        Vh = V.reshape(B, nk, h, d_v).transpose(0, 2, 1, 3)
        att = jnp.einsum("bhqd,bhkd->bhqk", Qh, Kh) / math.sqrt(d_k)
        att = jnp.where(cmask_bool[:, None, None, :], -jnp.inf, att)
        att = jax.nn.softmax(att, axis=-1)
        out = jnp.einsum("bhqk,bhkd->bhqd", att, Vh).transpose(0, 2, 1, 3).reshape(B, nq, h * d_v)
        score = out @ Wo.T + bo                       # (B, nq, 1)
        score = jnp.where(qm, -jnp.inf, score)
        score = jax.nn.softmax(score, axis=1)
        agg = queries * score
        res = jnp.sum(agg * qmf, axis=1) / jnp.sum(qmf, axis=1)
        outs.append(res[:, None, :])
    return jnp.concatenate(outs, axis=1)


if __name__ == "__main__":
    # module hyper-params (d_k, d_v divided by kv_score_div inside the module)
    d_model = 32
    d_k_full = d_v_full = 32
    h = 4
    kv_score_div = 4
    N_agg = 2
    dk = d_k_full // kv_score_div   # 8
    dv = d_v_full // kv_score_div   # 8
    B, nq, nk = 2, 8, 8

    key = jax.random.PRNGKey(0)
    k0, k1, k2, k3 = jax.random.split(key, 4)
    queries = jax.random.normal(k0, (B, nq, d_model), jnp.float32)
    cross_keys = jax.random.normal(k1, (B, nk, d_model), jnp.float32)
    cross_values = jax.random.normal(k2, (B, nk, d_model), jnp.float32)

    # True == padded position (torch masked_fill convention)
    attention_mask = jnp.array([[False] * 6 + [True] * 2,
                                [False] * 8], dtype=bool)                      # (B, nq)
    cross_attention_mask = jnp.array([[False] * 8,
                                      [False] * 5 + [True] * 3], dtype=bool)   # (B, nk)

    params = init_params(k3, N_agg, d_model, dk, dv, h)

    out = multi_head_attention_aggregation(
        queries, cross_keys, cross_values,
        attention_mask, cross_attention_mask, params,
        h=h, d_k=dk, d_v=dv)
    out = jax.block_until_ready(out)

    ref = reference(queries, cross_keys, cross_values,
                    attention_mask, cross_attention_mask, params, h, dk, dv)

    assert out.shape == (B, N_agg, d_model)
    assert bool(jnp.allclose(out, ref, rtol=1e-4, atol=1e-4)), \
        float(jnp.max(jnp.abs(out - ref)))
    print("KERNEL_OK")
</pallas_src>

<mosaic_0001>
module attributes {stable_mosaic.version = 11 : i64} {
  func.func @_attn_agg_kernel(%arg0: i32, %arg1: i32, %arg2: memref<2x8x32xf32, #tpu.memory_space<vmem>>, %arg3: memref<2x8x32xf32, #tpu.memory_space<vmem>>, %arg4: memref<2x8x32xf32, #tpu.memory_space<vmem>>, %arg5: memref<2x8x1xf32, #tpu.memory_space<vmem>>, %arg6: memref<2x1x8xf32, #tpu.memory_space<vmem>>, %arg7: memref<1x72x32xf32, #tpu.memory_space<vmem>>, %arg8: memref<1x4x32xf32, #tpu.memory_space<vmem>>, %arg9: memref<1x2x32xf32, #tpu.memory_space<vmem>>) attributes {dimension_semantics = [#tpu.dimension_semantics<parallel>, #tpu.dimension_semantics<parallel>], iteration_bounds = array<i64: 2, 1>, scalar_prefetch = 0 : i64, scratch_operands = 0 : i64, tpu.core_type = #tpu.core_type<tc>, window_params = [{transform_indices = @transform_0, window_bounds = array<i64: 2, 8, 32>}, {transform_indices = @transform_1, window_bounds = array<i64: 2, 8, 32>}, {transform_indices = @transform_2, window_bounds = array<i64: 2, 8, 32>}, {transform_indices = @transform_3, window_bounds = array<i64: 2, 8, 1>}, {transform_indices = @transform_4, window_bounds = array<i64: 2, 1, 8>}, {transform_indices = @transform_5, window_bounds = array<i64: 1, 72, 32>}, {transform_indices = @transform_6, window_bounds = array<i64: 1, 4, 32>}, {transform_indices = @transform_7, window_bounds = array<i64: 1, 2, 32>}]} {
    %c0 = arith.constant 0 : index
    %c0_0 = arith.constant 0 : index
    %c0_1 = arith.constant 0 : index
    %0 = vector.load %arg2[%c0, %c0_0, %c0_1] : memref<2x8x32xf32, #tpu.memory_space<vmem>>, vector<2x8x32xf32>
    %c0_2 = arith.constant 0 : index
    %c0_3 = arith.constant 0 : index
    %c0_4 = arith.constant 0 : index
    %1 = vector.load %arg3[%c0_2, %c0_3, %c0_4] : memref<2x8x32xf32, #tpu.memory_space<vmem>>, vector<2x8x32xf32>
    %c0_5 = arith.constant 0 : index
    %c0_6 = arith.constant 0 : index
    %c0_7 = arith.constant 0 : index
    %2 = vector.load %arg4[%c0_5, %c0_6, %c0_7] : memref<2x8x32xf32, #tpu.memory_space<vmem>>, vector<2x8x32xf32>
    %c0_8 = arith.constant 0 : index
    %c0_9 = arith.constant 0 : index
    %c0_10 = arith.constant 0 : index
    %3 = vector.load %arg5[%c0_8, %c0_9, %c0_10] : memref<2x8x1xf32, #tpu.memory_space<vmem>>, vector<2x8x1xf32>
    %c0_11 = arith.constant 0 : index
    %c0_12 = arith.constant 0 : index
    %c0_13 = arith.constant 0 : index
    %4 = vector.load %arg6[%c0_11, %c0_12, %c0_13] : memref<2x1x8xf32, #tpu.memory_space<vmem>>, vector<2x1x8xf32>
    %c0_14 = arith.constant 0 : index
    %c0_15 = arith.constant 0 : index
    %c0_16 = arith.constant 0 : index
    %5 = vector.load %arg7[%c0_14, %c0_15, %c0_16] : memref<1x72x32xf32, #tpu.memory_space<vmem>>, vector<1x32x32xf32>
    %6 = vector.shape_cast %5 : vector<1x32x32xf32> to vector<32x32xf32>
    %c0_17 = arith.constant 0 : index
    %c32 = arith.constant 32 : index
    %c0_18 = arith.constant 0 : index
    %7 = vector.load %arg7[%c0_17, %c32, %c0_18] : memref<1x72x32xf32, #tpu.memory_space<vmem>>, vector<1x32x32xf32>
    %8 = vector.shape_cast %7 : vector<1x32x32xf32> to vector<32x32xf32>
    %c0_19 = arith.constant 0 : index
    %c64 = arith.constant 64 : index
    %c0_20 = arith.constant 0 : index
    %9 = vector.load %arg7[%c0_19, %c64, %c0_20] : memref<1x72x32xf32, #tpu.memory_space<vmem>>, vector<1x8x32xf32>
    %10 = vector.shape_cast %9 : vector<1x8x32xf32> to vector<8x32xf32>
    %c0_21 = arith.constant 0 : index
    %c0_22 = arith.constant 0 : index
    %c0_23 = arith.constant 0 : index
    %11 = vector.load %arg8[%c0_21, %c0_22, %c0_23] : memref<1x4x32xf32, #tpu.memory_space<vmem>>, vector<1x1x32xf32>
    %12 = vector.shape_cast %11 : vector<1x1x32xf32> to vector<1x32xf32>
    %c0_24 = arith.constant 0 : index
    %c1 = arith.constant 1 : index
    %c0_25 = arith.constant 0 : index
    %13 = vector.load %arg8[%c0_24, %c1, %c0_25] : memref<1x4x32xf32, #tpu.memory_space<vmem>>, vector<1x1x32xf32>
    %14 = vector.shape_cast %13 : vector<1x1x32xf32> to vector<1x32xf32>
    %c0_26 = arith.constant 0 : index
    %c2 = arith.constant 2 : index
    %c0_27 = arith.constant 0 : index
    %15 = vector.load %arg8[%c0_26, %c2, %c0_27] : memref<1x4x32xf32, #tpu.memory_space<vmem>>, vector<1x1x8xf32>
    %16 = vector.shape_cast %15 : vector<1x1x8xf32> to vector<1x8xf32>
    %c0_28 = arith.constant 0 : index
    %c3 = arith.constant 3 : index
    %c0_29 = arith.constant 0 : index
    %17 = vector.load %arg8[%c0_28, %c3, %c0_29] : memref<1x4x32xf32, #tpu.memory_space<vmem>>, vector<1x1x1xf32>
    %18 = vector.shape_cast %17 : vector<1x1x1xf32> to vector<1x1xf32>
    %19 = vector.shape_cast %0 : vector<2x8x32xf32> to vector<16x32xf32>
    %20 = vector.shape_cast %1 : vector<2x8x32xf32> to vector<16x32xf32>
    %21 = vector.shape_cast %2 : vector<2x8x32xf32> to vector<16x32xf32>
    "tpu.trace_start"() <{level = 10 : i32, message = "md,kd->mk"}> : () -> ()
    %cst = arith.constant dense<0.000000e+00> : vector<16x32xf32>
    %22 = tpu.matmul %19, %6, %cst {dimension_numbers = #tpu.dot_dimension_numbers<[1], [1], [0], [0], [0, 0, 1, 0], [], []>} : vector<16x32xf32>, vector<32x32xf32>, vector<16x32xf32> -> vector<16x32xf32>
    "tpu.trace_stop"() : () -> ()
    %23 = vector.broadcast %12 : vector<1x32xf32> to vector<16x32xf32>
    %24 = arith.addf %22, %23 : vector<16x32xf32>
    "tpu.trace_start"() <{level = 10 : i32, message = "md,kd->mk"}> : () -> ()
    %cst_30 = arith.constant dense<0.000000e+00> : vector<16x32xf32>
    %25 = tpu.matmul %20, %8, %cst_30 {dimension_numbers = #tpu.dot_dimension_numbers<[1], [1], [0], [0], [0, 0, 1, 0], [], []>} : vector<16x32xf32>, vector<32x32xf32>, vector<16x32xf32> -> vector<16x32xf32>
    "tpu.trace_stop"() : () -> ()
    %26 = vector.broadcast %14 : vector<1x32xf32> to vector<16x32xf32>
    %27 = arith.addf %25, %26 : vector<16x32xf32>
    "tpu.trace_start"() <{level = 10 : i32, message = "md,hd->mh"}> : () -> ()
    %cst_31 = arith.constant dense<0.000000e+00> : vector<16x8xf32>
    %28 = tpu.matmul %21, %10, %cst_31 {dimension_numbers = #tpu.dot_dimension_numbers<[1], [1], [0], [0], [0, 0, 1, 0], [], []>} : vector<16x32xf32>, vector<8x32xf32>, vector<16x8xf32> -> vector<16x8xf32>
    "tpu.trace_stop"() : () -> ()
    %29 = vector.broadcast %16 : vector<1x8xf32> to vector<16x8xf32>
    %30 = arith.addf %28, %29 : vector<16x8xf32>
    %31 = vector.shape_cast %24 : vector<16x32xf32> to vector<2x8x32xf32>
    %32 = vector.shape_cast %27 : vector<16x32xf32> to vector<2x8x32xf32>
    %33 = vector.shape_cast %30 : vector<16x8xf32> to vector<2x8x8xf32>
    %cst_32 = arith.constant 5.000000e-01 : f32
    %34 = vector.broadcast %cst_32 : f32 to vector<2x1x8xf32>
    %35 = arith.cmpf ogt, %4, %34 : vector<2x1x8xf32>
    %cst_33 = arith.constant -1.000000e+30 : f32
    %cst_34 = arith.constant 0.000000e+00 : f32
    %36 = vector.broadcast %cst_33 : f32 to vector<2x1x8xf32>
    %37 = vector.broadcast %cst_34 : f32 to vector<2x1x8xf32>
    %38 = arith.select %35, %36, %37 : vector<2x1x8xi1>, vector<2x1x8xf32>
    %39 = vector.extract_strided_slice %31 {offsets = [0, 0, 0], sizes = [2, 8, 8], strides = [1, 1, 1]} : vector<2x8x32xf32> to vector<2x8x8xf32>
    %40 = vector.extract_strided_slice %32 {offsets = [0, 0, 0], sizes = [2, 8, 8], strides = [1, 1, 1]} : vector<2x8x32xf32> to vector<2x8x8xf32>
    %41 = vector.extract_strided_slice %33 {offsets = [0, 0, 0], sizes = [2, 8, 1], strides = [1, 1, 1]} : vector<2x8x8xf32> to vector<2x8x1xf32>
    "tpu.trace_start"() <{level = 10 : i32, message = "bqd,bkd->bqk"}> : () -> ()
    %cst_35 = arith.constant dense<0.000000e+00> : vector<2x8x8xf32>
    %42 = tpu.matmul %39, %40, %cst_35 {dimension_numbers = #tpu.dot_dimension_numbers<[2], [2], [1], [1], [0, 0, 0, 1, 1, 1], [0], [0]>} : vector<2x8x8xf32>, vector<2x8x8xf32>, vector<2x8x8xf32> -> vector<2x8x8xf32>
    "tpu.trace_stop"() : () -> ()
    %cst_36 = arith.constant 0.353553385 : f32
    %43 = vector.broadcast %cst_36 : f32 to vector<2x8x8xf32>
    %44 = arith.mulf %42, %43 : vector<2x8x8xf32>
    %45 = vector.broadcast %38 : vector<2x1x8xf32> to vector<2x8x8xf32>
    %46 = arith.addf %44, %45 : vector<2x8x8xf32>
    %cst_37 = arith.constant dense<0xFF800000> : vector<2x8xf32>
    %47 = vector.multi_reduction <maximumf>, %46, %cst_37 [2] : vector<2x8x8xf32> to vector<2x8xf32>
    %48 = vector.shape_cast %47 : vector<2x8xf32> to vector<2x8x1xf32>
    %49 = vector.broadcast %48 : vector<2x8x1xf32> to vector<2x8x8xf32>
    %50 = arith.subf %46, %49 : vector<2x8x8xf32>
    %51 = math.exp %50 : vector<2x8x8xf32>
    %cst_38 = arith.constant dense<0.000000e+00> : vector<2x8xf32>
    %52 = vector.multi_reduction <add>, %51, %cst_38 [2] : vector<2x8x8xf32> to vector<2x8xf32>
    %53 = vector.shape_cast %52 : vector<2x8xf32> to vector<2x8x1xf32>
    "tpu.trace_start"() <{level = 10 : i32, message = "bqk,bkh->bqh"}> : () -> ()
    %cst_39 = arith.constant dense<0.000000e+00> : vector<2x8x1xf32>
    %54 = tpu.matmul %51, %41, %cst_39 {dimension_numbers = #tpu.dot_dimension_numbers<[2], [1], [1], [2], [0, 0, 0, 1, 1, 2], [0], [0]>} : vector<2x8x8xf32>, vector<2x8x1xf32>, vector<2x8x1xf32> -> vector<2x8x1xf32>
    "tpu.trace_stop"() : () -> ()
    %55 = tpu.reciprocal %53 : vector<2x8x1xf32> -> vector<2x8x1xf32>
    %56 = arith.mulf %54, %55 : vector<2x8x1xf32>
    %57 = vector.extract_strided_slice %31 {offsets = [0, 0, 8], sizes = [2, 8, 8], strides = [1, 1, 1]} : vector<2x8x32xf32> to vector<2x8x8xf32>
    %58 = vector.extract_strided_slice %32 {offsets = [0, 0, 8], sizes = [2, 8, 8], strides = [1, 1, 1]} : vector<2x8x32xf32> to vector<2x8x8xf32>
    %59 = vector.extract_strided_slice %33 {offsets = [0, 0, 1], sizes = [2, 8, 1], strides = [1, 1, 1]} : vector<2x8x8xf32> to vector<2x8x1xf32>
    "tpu.trace_start"() <{level = 10 : i32, message = "bqd,bkd->bqk"}> : () -> ()
    %cst_40 = arith.constant dense<0.000000e+00> : vector<2x8x8xf32>
    %60 = tpu.matmul %57, %58, %cst_40 {dimension_numbers = #tpu.dot_dimension_numbers<[2], [2], [1], [1], [0, 0, 0, 1, 1, 1], [0], [0]>} : vector<2x8x8xf32>, vector<2x8x8xf32>, vector<2x8x8xf32> -> vector<2x8x8xf32>
    "tpu.trace_stop"() : () -> ()
    %cst_41 = arith.constant 0.353553385 : f32
    %61 = vector.broadcast %cst_41 : f32 to vector<2x8x8xf32>
    %62 = arith.mulf %60, %61 : vector<2x8x8xf32>
    %63 = vector.broadcast %38 : vector<2x1x8xf32> to vector<2x8x8xf32>
    %64 = arith.addf %62, %63 : vector<2x8x8xf32>
    %cst_42 = arith.constant dense<0xFF800000> : vector<2x8xf32>
    %65 = vector.multi_reduction <maximumf>, %64, %cst_42 [2] : vector<2x8x8xf32> to vector<2x8xf32>
    %66 = vector.shape_cast %65 : vector<2x8xf32> to vector<2x8x1xf32>
    %67 = vector.broadcast %66 : vector<2x8x1xf32> to vector<2x8x8xf32>
    %68 = arith.subf %64, %67 : vector<2x8x8xf32>
    %69 = math.exp %68 : vector<2x8x8xf32>
    %cst_43 = arith.constant dense<0.000000e+00> : vector<2x8xf32>
    %70 = vector.multi_reduction <add>, %69, %cst_43 [2] : vector<2x8x8xf32> to vector<2x8xf32>
    %71 = vector.shape_cast %70 : vector<2x8xf32> to vector<2x8x1xf32>
    "tpu.trace_start"() <{level = 10 : i32, message = "bqk,bkh->bqh"}> : () -> ()
    %cst_44 = arith.constant dense<0.000000e+00> : vector<2x8x1xf32>
    %72 = tpu.matmul %69, %59, %cst_44 {dimension_numbers = #tpu.dot_dimension_numbers<[2], [1], [1], [2], [0, 0, 0, 1, 1, 2], [0], [0]>} : vector<2x8x8xf32>, vector<2x8x1xf32>, vector<2x8x1xf32> -> vector<2x8x1xf32>
    "tpu.trace_stop"() : () -> ()
    %73 = tpu.reciprocal %71 : vector<2x8x1xf32> -> vector<2x8x1xf32>
    %74 = arith.mulf %72, %73 : vector<2x8x1xf32>
    %75 = arith.addf %56, %74 : vector<2x8x1xf32>
    %76 = vector.extract_strided_slice %31 {offsets = [0, 0, 16], sizes = [2, 8, 8], strides = [1, 1, 1]} : vector<2x8x32xf32> to vector<2x8x8xf32>
    %77 = vector.extract_strided_slice %32 {offsets = [0, 0, 16], sizes = [2, 8, 8], strides = [1, 1, 1]} : vector<2x8x32xf32> to vector<2x8x8xf32>
    %78 = vector.extract_strided_slice %33 {offsets = [0, 0, 2], sizes = [2, 8, 1], strides = [1, 1, 1]} : vector<2x8x8xf32> to vector<2x8x1xf32>
    "tpu.trace_start"() <{level = 10 : i32, message = "bqd,bkd->bqk"}> : () -> ()
    %cst_45 = arith.constant dense<0.000000e+00> : vector<2x8x8xf32>
    %79 = tpu.matmul %76, %77, %cst_45 {dimension_numbers = #tpu.dot_dimension_numbers<[2], [2], [1], [1], [0, 0, 0, 1, 1, 1], [0], [0]>} : vector<2x8x8xf32>, vector<2x8x8xf32>, vector<2x8x8xf32> -> vector<2x8x8xf32>
    "tpu.trace_stop"() : () -> ()
    %cst_46 = arith.constant 0.353553385 : f32
    %80 = vector.broadcast %cst_46 : f32 to vector<2x8x8xf32>
    %81 = arith.mulf %79, %80 : vector<2x8x8xf32>
    %82 = vector.broadcast %38 : vector<2x1x8xf32> to vector<2x8x8xf32>
    %83 = arith.addf %81, %82 : vector<2x8x8xf32>
    %cst_47 = arith.constant dense<0xFF800000> : vector<2x8xf32>
    %84 = vector.multi_reduction <maximumf>, %83, %cst_47 [2] : vector<2x8x8xf32> to vector<2x8xf32>
    %85 = vector.shape_cast %84 : vector<2x8xf32> to vector<2x8x1xf32>
    %86 = vector.broadcast %85 : vector<2x8x1xf32> to vector<2x8x8xf32>
    %87 = arith.subf %83, %86 : vector<2x8x8xf32>
    %88 = math.exp %87 : vector<2x8x8xf32>
    %cst_48 = arith.constant dense<0.000000e+00> : vector<2x8xf32>
    %89 = vector.multi_reduction <add>, %88, %cst_48 [2] : vector<2x8x8xf32> to vector<2x8xf32>
    %90 = vector.shape_cast %89 : vector<2x8xf32> to vector<2x8x1xf32>
    "tpu.trace_start"() <{level = 10 : i32, message = "bqk,bkh->bqh"}> : () -> ()
    %cst_49 = arith.constant dense<0.000000e+00> : vector<2x8x1xf32>
    %91 = tpu.matmul %88, %78, %cst_49 {dimension_numbers = #tpu.dot_dimension_numbers<[2], [1], [1], [2], [0, 0, 0, 1, 1, 2], [0], [0]>} : vector<2x8x8xf32>, vector<2x8x1xf32>, vector<2x8x1xf32> -> vector<2x8x1xf32>
    "tpu.trace_stop"() : () -> ()
    %92 = tpu.reciprocal %90 : vector<2x8x1xf32> -> vector<2x8x1xf32>
    %93 = arith.mulf %91, %92 : vector<2x8x1xf32>
    %94 = arith.addf %75, %93 : vector<2x8x1xf32>
    %95 = vector.extract_strided_slice %31 {offsets = [0, 0, 24], sizes = [2, 8, 8], strides = [1, 1, 1]} : vector<2x8x32xf32> to vector<2x8x8xf32>
    %96 = vector.extract_strided_slice %32 {offsets = [0, 0, 24], sizes = [2, 8, 8], strides = [1, 1, 1]} : vector<2x8x32xf32> to vector<2x8x8xf32>
    %97 = vector.extract_strided_slice %33 {offsets = [0, 0, 3], sizes = [2, 8, 1], strides = [1, 1, 1]} : vector<2x8x8xf32> to vector<2x8x1xf32>
    "tpu.trace_start"() <{level = 10 : i32, message = "bqd,bkd->bqk"}> : () -> ()
    %cst_50 = arith.constant dense<0.000000e+00> : vector<2x8x8xf32>
    %98 = tpu.matmul %95, %96, %cst_50 {dimension_numbers = #tpu.dot_dimension_numbers<[2], [2], [1], [1], [0, 0, 0, 1, 1, 1], [0], [0]>} : vector<2x8x8xf32>, vector<2x8x8xf32>, vector<2x8x8xf32> -> vector<2x8x8xf32>
    "tpu.trace_stop"() : () -> ()
    %cst_51 = arith.constant 0.353553385 : f32
    %99 = vector.broadcast %cst_51 : f32 to vector<2x8x8xf32>
    %100 = arith.mulf %98, %99 : vector<2x8x8xf32>
    %101 = vector.broadcast %38 : vector<2x1x8xf32> to vector<2x8x8xf32>
    %102 = arith.addf %100, %101 : vector<2x8x8xf32>
    %cst_52 = arith.constant dense<0xFF800000> : vector<2x8xf32>
    %103 = vector.multi_reduction <maximumf>, %102, %cst_52 [2] : vector<2x8x8xf32> to vector<2x8xf32>
    %104 = vector.shape_cast %103 : vector<2x8xf32> to vector<2x8x1xf32>
    %105 = vector.broadcast %104 : vector<2x8x1xf32> to vector<2x8x8xf32>
    %106 = arith.subf %102, %105 : vector<2x8x8xf32>
    %107 = math.exp %106 : vector<2x8x8xf32>
    %cst_53 = arith.constant dense<0.000000e+00> : vector<2x8xf32>
    %108 = vector.multi_reduction <add>, %107, %cst_53 [2] : vector<2x8x8xf32> to vector<2x8xf32>
    %109 = vector.shape_cast %108 : vector<2x8xf32> to vector<2x8x1xf32>
    "tpu.trace_start"() <{level = 10 : i32, message = "bqk,bkh->bqh"}> : () -> ()
    %cst_54 = arith.constant dense<0.000000e+00> : vector<2x8x1xf32>
    %110 = tpu.matmul %107, %97, %cst_54 {dimension_numbers = #tpu.dot_dimension_numbers<[2], [1], [1], [2], [0, 0, 0, 1, 1, 2], [0], [0]>} : vector<2x8x8xf32>, vector<2x8x1xf32>, vector<2x8x1xf32> -> vector<2x8x1xf32>
    "tpu.trace_stop"() : () -> ()
    %111 = tpu.reciprocal %109 : vector<2x8x1xf32> -> vector<2x8x1xf32>
    %112 = arith.mulf %110, %111 : vector<2x8x1xf32>
    %113 = arith.addf %94, %112 : vector<2x8x1xf32>
    %114 = vector.shape_cast %18 : vector<1x1xf32> to vector<1x1x1xf32>
    %115 = vector.broadcast %114 : vector<1x1x1xf32> to vector<2x8x1xf32>
    %116 = arith.addf %113, %115 : vector<2x8x1xf32>
    %cst_55 = arith.constant 5.000000e-01 : f32
    %117 = vector.broadcast %cst_55 : f32 to vector<2x8x1xf32>
    %118 = arith.cmpf ogt, %3, %117 : vector<2x8x1xf32>
    %cst_56 = arith.constant -1.000000e+30 : f32
    %119 = vector.broadcast %cst_56 : f32 to vector<2x8x1xf32>
    %120 = arith.select %118, %119, %116 : vector<2x8x1xi1>, vector<2x8x1xf32>
    %cst_57 = arith.constant dense<0xFF800000> : vector<2x1xf32>
    %121 = vector.multi_reduction <maximumf>, %120, %cst_57 [1] : vector<2x8x1xf32> to vector<2x1xf32>
    %122 = vector.shape_cast %121 : vector<2x1xf32> to vector<2x1x1xf32>
    %123 = vector.broadcast %122 : vector<2x1x1xf32> to vector<2x8x1xf32>
    %124 = arith.subf %120, %123 : vector<2x8x1xf32>
    %125 = math.exp %124 : vector<2x8x1xf32>
    %cst_58 = arith.constant dense<0.000000e+00> : vector<2x1xf32>
    %126 = vector.multi_reduction <add>, %125, %cst_58 [1] : vector<2x8x1xf32> to vector<2x1xf32>
    %127 = vector.shape_cast %126 : vector<2x1xf32> to vector<2x1x1xf32>
    %128 = tpu.reciprocal %127 : vector<2x1x1xf32> -> vector<2x1x1xf32>
    %129 = vector.broadcast %128 : vector<2x1x1xf32> to vector<2x8x1xf32>
    %130 = arith.mulf %125, %129 : vector<2x8x1xf32>
    %cst_59 = arith.constant 1.000000e+00 : f32
    %131 = vector.broadcast %cst_59 : f32 to vector<2x8x1xf32>
    %132 = arith.subf %131, %3 : vector<2x8x1xf32>
    %cst_60 = arith.constant dense<0.000000e+00> : vector<2x1xf32>
    %133 = vector.multi_reduction <add>, %132, %cst_60 [1] : vector<2x8x1xf32> to vector<2x1xf32>
    %134 = vector.shape_cast %133 : vector<2x1xf32> to vector<2x1x1xf32>
    %135 = arith.mulf %130, %132 : vector<2x8x1xf32>
    %136 = tpu.reciprocal %134 : vector<2x1x1xf32> -> vector<2x1x1xf32>
    %137 = vector.broadcast %136 : vector<2x1x1xf32> to vector<2x8x1xf32>
    %138 = arith.mulf %135, %137 : vector<2x8x1xf32>
    %139 = vector.broadcast %138 : vector<2x8x1xf32> to vector<2x8x32xf32>
    %140 = arith.mulf %0, %139 : vector<2x8x32xf32>
    %cst_61 = arith.constant dense<0.000000e+00> : vector<2x32xf32>
    %141 = vector.multi_reduction <add>, %140, %cst_61 [1] : vector<2x8x32xf32> to vector<2x32xf32>
    %142 = vector.shape_cast %141 : vector<2x32xf32> to vector<2x1x32xf32>
    %143 = vector.shape_cast %142 : vector<2x1x32xf32> to vector<1x2x32xf32>
    %c0_62 = arith.constant 0 : index
    %c0_63 = arith.constant 0 : index
    %c0_64 = arith.constant 0 : index
    %144 = vector.load %arg9[%c0_62, %c0_63, %c0_64] : memref<1x2x32xf32, #tpu.memory_space<vmem>>, vector<1x2x32xf32>
    tpu.vector_store %arg9[%c0_62, %c0_63, %c0_64], %143 {strides = array<i32>} : memref<1x2x32xf32, #tpu.memory_space<vmem>>, vector<1x2x32xf32>,
    return
  }
  func.func @transform_0(%arg0: i32, %arg1: i32) -> (i32, i32, i32) {
    %c0_i32 = arith.constant 0 : i32
    %c0_i32_0 = arith.constant 0 : i32
    %c0_i32_1 = arith.constant 0 : i32
    return %arg1, %c0_i32, %c0_i32_0 : i32, i32, i32
  }
  func.func @transform_1(%arg0: i32, %arg1: i32) -> (i32, i32, i32) {
    %c0_i32 = arith.constant 0 : i32
    %c0_i32_0 = arith.constant 0 : i32
    %c0_i32_1 = arith.constant 0 : i32
    return %arg1, %c0_i32, %c0_i32_0 : i32, i32, i32
  }
  func.func @transform_2(%arg0: i32, %arg1: i32) -> (i32, i32, i32) {
    %c0_i32 = arith.constant 0 : i32
    %c0_i32_0 = arith.constant 0 : i32
    %c0_i32_1 = arith.constant 0 : i32
    return %arg1, %c0_i32, %c0_i32_0 : i32, i32, i32
  }
  func.func @transform_3(%arg0: i32, %arg1: i32) -> (i32, i32, i32) {
    %c0_i32 = arith.constant 0 : i32
    %c0_i32_0 = arith.constant 0 : i32
    %c0_i32_1 = arith.constant 0 : i32
    return %arg1, %c0_i32, %c0_i32_0 : i32, i32, i32
  }
  func.func @transform_4(%arg0: i32, %arg1: i32) -> (i32, i32, i32) {
    %c0_i32 = arith.constant 0 : i32
    %c0_i32_0 = arith.constant 0 : i32
    %c0_i32_1 = arith.constant 0 : i32
    return %arg1, %c0_i32, %c0_i32_0 : i32, i32, i32
  }
  func.func @transform_5(%arg0: i32, %arg1: i32) -> (i32, i32, i32) {
    %c0_i32 = arith.constant 0 : i32
    %c0_i32_0 = arith.constant 0 : i32
    %c0_i32_1 = arith.constant 0 : i32
    return %arg0, %c0_i32, %c0_i32_0 : i32, i32, i32
  }
  func.func @transform_6(%arg0: i32, %arg1: i32) -> (i32, i32, i32) {
    %c0_i32 = arith.constant 0 : i32
    %c0_i32_0 = arith.constant 0 : i32
    %c0_i32_1 = arith.constant 0 : i32
    return %arg0, %c0_i32, %c0_i32_0 : i32, i32, i32
  }
  func.func @transform_7(%arg0: i32, %arg1: i32) -> (i32, i32, i32) {
    %c0_i32 = arith.constant 0 : i32
    %c0_i32_0 = arith.constant 0 : i32
    return %arg0, %arg1, %c0_i32 : i32, i32, i32
  }
}

</mosaic_0001>

<llo_original>
// kernel: tpu_custom_call.1
$region0: #{tpu_custom_call.1}
  #allocation0 [shape = 'u32[]', space=smem, size = 0x4, offset = 0x4, fixed_abs, tag = 'smem constant byte address 0x4 - core index']
  #allocation1 [shape = 'u32[72,128]{1,0:T(1,128)}', space=vmem, size = 0x9000, scoped, tag = 'internal scratch']
  %s0 = inlined_call_operand.vmem [shape: f32[2,8,32], index: 0, kind: input, shape index: {}]
  %s1 = inlined_call_operand.vmem [shape: f32[2,8,32], index: 1, kind: input, shape index: {}]
  %s2 = inlined_call_operand.vmem [shape: f32[2,8,32], index: 2, kind: input, shape index: {}]
  %s3 = inlined_call_operand.vmem [shape: f32[2,8,1], index: 3, kind: input, shape index: {}]
  %s4 = inlined_call_operand.vmem [shape: f32[2,1,8], index: 4, kind: input, shape index: {}]
  %s5 = inlined_call_operand.vmem [shape: f32[2,72,32], index: 5, kind: input, shape index: {}]
  %s6 = inlined_call_operand.vmem [shape: f32[2,4,32], index: 6, kind: input, shape index: {}]
  %s7 = inlined_call_operand.hbm [shape: f32[2,2,32], index: 7, kind: output, shape index: {}]
  %s8 = sld [smem:[#allocation0]]
  $region61: #{tpu_custom_call.1} parent=0
    _
  %s10 = ssub.s32 1, %s8
  %s11 = scalar_select 0, %s10, %s8
  $region1: #{tpu_custom_call.1} parent=0
    #allocation2 [shape = 'u8[2048]{0}', space=vmem, size = 0x800, scoped, tag = 'output window, operand 0']
    #allocation3 [shape = 's32[2]{0}', space=sflag, size = 0x8, scoped, tag = 'scoped memory for tpu_custom_call.1']
    %12 = vsyncpa [#allocation3], 0
    %s13 = scalar_lea.sflag [#allocation3], 1
    %14 = vsyncpa %s13, 0
    loop: start=0, step=1, limit=4
    $region2: #{tpu_custom_call.1} parent=1 // loop_pre_header
      _
    $region3: #{tpu_custom_call.1} parent=1 // loop_header
      %s16 = sphi 0, %s20
      %p17 = scmp.ge.s32.totalorder %s16, 4
      %s23 = sphi 0, %s35
      %s24 = sphi 0, %s31
      %s25 = sphi 0, %s23
      %s26 = sphi 0, %s24
      %s27 = sphi 0, %s25
      %s28 = sphi 0, %s26
      %s38 = sphi 0, %s40
      %s41 = sphi 0, %s38
      %s42 = sphi 0, %s41
      %s58 = sphi 0, %s42
      %s64 = sphi 0, %s66
      %s67 = sphi 0, %s64
      %s68 = sphi 0, %s67
      %s84 = sphi 0, %s68
      %s90 = sphi 0, %s92
      %s93 = sphi 0, %s90
      %s94 = sphi 0, %s93
      %s110 = sphi 0, %s94
      %s116 = sphi 0, %s118
      %s119 = sphi 0, %s116
      %s120 = sphi 0, %s119
      %s136 = sphi 0, %s120
      %s142 = sphi 0, %s144
      %s145 = sphi 0, %s142
      %s146 = sphi 0, %s145
      %s162 = sphi 0, %s146
      %s168 = sphi 0, %s170
      %s171 = sphi 0, %s168
      %s172 = sphi 0, %s171
      %s188 = sphi 0, %s172
      %s194 = sphi 0, %s196
      %s197 = sphi 0, %s194
      %s198 = sphi 0, %s197
      %s214 = sphi 0, %s198
      %s222 = sphi 0, %s224
      %s225 = sphi 0, %s222
      %s226 = sphi 0, %s225
      %s242 = sphi 0, %s226
    $region4: #{tpu_custom_call.1} parent=1 // loop_header_branch
      %19 = sbr.rel (%p17) target = $region8
    $region5: #{tpu_custom_call.1} parent=1 // loop_body
      %s21 = ssub.s32 %s16, 1
      %s22 = ssub.s32 %s16, 2
      %s29 = sadd.s32 1, %s24
      %p30 = scmp.ge.s32.totalorder %s29, 1
      %s31 = scalar_select %p30, 0, %s29
      %s32 = sadd.s32 1, %s23
      %s33 = scalar_select %p30, %s32, %s23
      %p34 = scmp.ge.s32.totalorder %s33, 2
      %s35 = scalar_select %p34, 0, %s33
      %s36 = ssub.s32 %s24, %s31
      %p37 = scmp.eq.s32.totalorder %s36, 0
      %s39 = sadd.s32 %s38, 1
      %s40 = scalar_select %p37, %s38, %s39
      %p43 = pneg %p37
      %p44 = scmp.eq.s32.totalorder %s16, 1
      %p45 = por %p43, %p44
      %p46 = scmp.ne.s32.totalorder %s38, %s41
      %p47 = scmp.eq.s32.totalorder %s16, 0
      %p48 = por %p46, %p47
      %p49 = scmp.ne.s32.totalorder %s38, %s41
      %p50 = scmp.eq.s32.totalorder %s21, 1
      %p51 = por %p49, %p50
      %p52 = scmp.ne.s32.totalorder %s41, %s42
      %p53 = scmp.eq.s32.totalorder %s21, 0
      %p54 = por %p52, %p53
      %p55 = scmp.ne.s32.totalorder %s41, %s42
      %p56 = scmp.eq.s32.totalorder %s22, 1
      %p57 = por %p55, %p56
      %p59 = scmp.ne.s32.totalorder %s42, %s58
      %p60 = scmp.eq.s32.totalorder %s22, 0
      %p61 = por %p59, %p60
      %s62 = ssub.s32 %s24, %s31
      %p63 = scmp.eq.s32.totalorder %s62, 0
      %s65 = sadd.s32 %s64, 1
      %s66 = scalar_select %p63, %s64, %s65
      %p69 = pneg %p63
      %p70 = scmp.eq.s32.totalorder %s16, 1
      %p71 = por %p69, %p70
      %p72 = scmp.ne.s32.totalorder %s64, %s67
      %p73 = scmp.eq.s32.totalorder %s16, 0
      %p74 = por %p72, %p73
      %p75 = scmp.ne.s32.totalorder %s64, %s67
      %p76 = scmp.eq.s32.totalorder %s21, 1
      %p77 = por %p75, %p76
      %p78 = scmp.ne.s32.totalorder %s67, %s68
      %p79 = scmp.eq.s32.totalorder %s21, 0
      %p80 = por %p78, %p79
      %p81 = scmp.ne.s32.totalorder %s67, %s68
      %p82 = scmp.eq.s32.totalorder %s22, 1
      %p83 = por %p81, %p82
      %p85 = scmp.ne.s32.totalorder %s68, %s84
      %p86 = scmp.eq.s32.totalorder %s22, 0
      %p87 = por %p85, %p86
      %s88 = ssub.s32 %s24, %s31
      %p89 = scmp.eq.s32.totalorder %s88, 0
      %s91 = sadd.s32 %s90, 1
      %s92 = scalar_select %p89, %s90, %s91
      %p95 = pneg %p89
      %p96 = scmp.eq.s32.totalorder %s16, 1
      %p97 = por %p95, %p96
      %p98 = scmp.ne.s32.totalorder %s90, %s93
      %p99 = scmp.eq.s32.totalorder %s16, 0
      %p100 = por %p98, %p99
      %p101 = scmp.ne.s32.totalorder %s90, %s93
      %p102 = scmp.eq.s32.totalorder %s21, 1
      %p103 = por %p101, %p102
      %p104 = scmp.ne.s32.totalorder %s93, %s94
      %p105 = scmp.eq.s32.totalorder %s21, 0
      %p106 = por %p104, %p105
      %p107 = scmp.ne.s32.totalorder %s93, %s94
      %p108 = scmp.eq.s32.totalorder %s22, 1
      %p109 = por %p107, %p108
      %p111 = scmp.ne.s32.totalorder %s94, %s110
      %p112 = scmp.eq.s32.totalorder %s22, 0
      %p113 = por %p111, %p112
      %s114 = ssub.s32 %s24, %s31
      %p115 = scmp.eq.s32.totalorder %s114, 0
      %s117 = sadd.s32 %s116, 1
      %s118 = scalar_select %p115, %s116, %s117
      %p121 = pneg %p115
      %p122 = scmp.eq.s32.totalorder %s16, 1
      %p123 = por %p121, %p122
      %p124 = scmp.ne.s32.totalorder %s116, %s119
      %p125 = scmp.eq.s32.totalorder %s16, 0
      %p126 = por %p124, %p125
      %p127 = scmp.ne.s32.totalorder %s116, %s119
      %p128 = scmp.eq.s32.totalorder %s21, 1
      %p129 = por %p127, %p128
      %p130 = scmp.ne.s32.totalorder %s119, %s120
      %p131 = scmp.eq.s32.totalorder %s21, 0
      %p132 = por %p130, %p131
      %p133 = scmp.ne.s32.totalorder %s119, %s120
      %p134 = scmp.eq.s32.totalorder %s22, 1
      %p135 = por %p133, %p134
      %p137 = scmp.ne.s32.totalorder %s120, %s136
      %p138 = scmp.eq.s32.totalorder %s22, 0
      %p139 = por %p137, %p138
      %s140 = ssub.s32 %s24, %s31
      %p141 = scmp.eq.s32.totalorder %s140, 0
      %s143 = sadd.s32 %s142, 1
      %s144 = scalar_select %p141, %s142, %s143
      %p147 = pneg %p141
      %p148 = scmp.eq.s32.totalorder %s16, 1
      %p149 = por %p147, %p148
      %p150 = scmp.ne.s32.totalorder %s142, %s145
      %p151 = scmp.eq.s32.totalorder %s16, 0
      %p152 = por %p150, %p151
      %p153 = scmp.ne.s32.totalorder %s142, %s145
      %p154 = scmp.eq.s32.totalorder %s21, 1
      %p155 = por %p153, %p154
      %p156 = scmp.ne.s32.totalorder %s145, %s146
      %p157 = scmp.eq.s32.totalorder %s21, 0
      %p158 = por %p156, %p157
      %p159 = scmp.ne.s32.totalorder %s145, %s146
      %p160 = scmp.eq.s32.totalorder %s22, 1
      %p161 = por %p159, %p160
      %p163 = scmp.ne.s32.totalorder %s146, %s162
      %p164 = scmp.eq.s32.totalorder %s22, 0
      %p165 = por %p163, %p164
      %s166 = ssub.s32 %s23, %s35
      %p167 = scmp.eq.s32.totalorder %s166, 0
      %s169 = sadd.s32 %s168, 1
      %s170 = scalar_select %p167, %s168, %s169
      %p173 = pneg %p167
      %p174 = scmp.eq.s32.totalorder %s16, 1
      %p175 = por %p173, %p174
      %p176 = scmp.ne.s32.totalorder %s168, %s171
      %p177 = scmp.eq.s32.totalorder %s16, 0
      %p178 = por %p176, %p177
      %p179 = scmp.ne.s32.totalorder %s168, %s171
      %p180 = scmp.eq.s32.totalorder %s21, 1
      %p181 = por %p179, %p180
      %p182 = scmp.ne.s32.totalorder %s171, %s172
      %p183 = scmp.eq.s32.totalorder %s21, 0
      %p184 = por %p182, %p183
      %p185 = scmp.ne.s32.totalorder %s171, %s172
      %p186 = scmp.eq.s32.totalorder %s22, 1
      %p187 = por %p185, %p186
      %p189 = scmp.ne.s32.totalorder %s172, %s188
      %p190 = scmp.eq.s32.totalorder %s22, 0
      %p191 = por %p189, %p190
      %s192 = ssub.s32 %s23, %s35
      %p193 = scmp.eq.s32.totalorder %s192, 0
      %s195 = sadd.s32 %s194, 1
      %s196 = scalar_select %p193, %s194, %s195
      %p199 = pneg %p193
      %p200 = scmp.eq.s32.totalorder %s16, 1
      %p201 = por %p199, %p200
      %p202 = scmp.ne.s32.totalorder %s194, %s197
      %p203 = scmp.eq.s32.totalorder %s16, 0
      %p204 = por %p202, %p203
      %p205 = scmp.ne.s32.totalorder %s194, %s197
      %p206 = scmp.eq.s32.totalorder %s21, 1
      %p207 = por %p205, %p206
      %p208 = scmp.ne.s32.totalorder %s197, %s198
      %p209 = scmp.eq.s32.totalorder %s21, 0
      %p210 = por %p208, %p209
      %p211 = scmp.ne.s32.totalorder %s197, %s198
      %p212 = scmp.eq.s32.totalorder %s22, 1
      %p213 = por %p211, %p212
      %p215 = scmp.ne.s32.totalorder %s198, %s214
      %p216 = scmp.eq.s32.totalorder %s22, 0
      %p217 = por %p215, %p216
      %s218 = ssub.s32 %s23, %s35
      %s219 = ssub.s32 %s24, %s31
      %s220 = sor.u32 %s218, %s219
      %p221 = scmp.eq.s32.totalorder %s220, 0
      %s223 = sadd.s32 %s222, 1
      %s224 = scalar_select %p221, %s222, %s223
      %p227 = pneg %p221
      %p228 = scmp.eq.s32.totalorder %s16, 1
      %p229 = por %p227, %p228
      %p230 = scmp.ne.s32.totalorder %s222, %s225
      %p231 = scmp.eq.s32.totalorder %s16, 0
      %p232 = por %p230, %p231
      %p233 = scmp.ne.s32.totalorder %s222, %s225
      %p234 = scmp.eq.s32.totalorder %s21, 1
      %p235 = por %p233, %p234
      %p236 = scmp.ne.s32.totalorder %s225, %s226
      %p237 = scmp.eq.s32.totalorder %s21, 0
      %p238 = por %p236, %p237
      %p239 = scmp.ne.s32.totalorder %s225, %s226
      %p240 = scmp.eq.s32.totalorder %s22, 1
      %p241 = por %p239, %p240
      %p243 = scmp.ne.s32.totalorder %s226, %s242
      %p244 = scmp.eq.s32.totalorder %s22, 0
      %p245 = por %p243, %p244
      %p246 = scmp.le.s32.totalorder 1, %s16
      %p247 = scmp.lt.s32.totalorder %s16, 3
      %p248 = pnand %p246, %p247
      %p249 = pneg %p248
      // Predicated region
      $region9: #{tpu_custom_call.1} parent=5 // pred_check
        _
      $region10: #{tpu_custom_call.1} parent=5 // pred_check_branch
        %251 = sbr.rel (%p248) target = $region12
      $region11: #{tpu_custom_call.1} parent=5 // pred_region
        %s252 = ssub.s32 %s16, 1
        // Predicated region
        $region13: #{tpu_custom_call.1} parent=11 // pred_check
          %p253 = pneg %p54
        $region14: #{tpu_custom_call.1} parent=11 // pred_check_branch
          %255 = sbr.rel (%p253) target = $region16
        $region15: #{tpu_custom_call.1} parent=11 // pred_region
          %s256 = smul.u32 2, %s26
          %p257 = scmp.lt.s32.totalorder %s256, 1
          %s258 = scalar_select %p257, %s256, 1
          %s259 = smul.addr %s258, 8
          %s260 = scalar_lea.vmem %s0, %s259
          %s261 = smul.u32 2, %s26
        $region16: #{tpu_custom_call.1} parent=11 // pred_fallthru
          _
        // Predicated region
        $region17: #{tpu_custom_call.1} parent=11 // pred_check
          %p262 = pneg %p80
        $region18: #{tpu_custom_call.1} parent=11 // pred_check_branch
          %264 = sbr.rel (%p262) target = $region20
        $region19: #{tpu_custom_call.1} parent=11 // pred_region
          %s265 = smul.u32 2, %s26
          %p266 = scmp.lt.s32.totalorder %s265, 1
          %s267 = scalar_select %p266, %s265, 1
          %s268 = smul.addr %s267, 8
          %s269 = scalar_lea.vmem %s1, %s268
          %s270 = smul.u32 2, %s26
        $region20: #{tpu_custom_call.1} parent=11 // pred_fallthru
          _
        // Predicated region
        $region21: #{tpu_custom_call.1} parent=11 // pred_check
          %p271 = pneg %p106
        $region22: #{tpu_custom_call.1} parent=11 // pred_check_branch
          %273 = sbr.rel (%p271) target = $region24
        $region23: #{tpu_custom_call.1} parent=11 // pred_region
          %s274 = smul.u32 2, %s26
          %p275 = scmp.lt.s32.totalorder %s274, 1
          %s276 = scalar_select %p275, %s274, 1
          %s277 = smul.addr %s276, 8
          %s278 = scalar_lea.vmem %s2, %s277
          %s279 = smul.u32 2, %s26
        $region24: #{tpu_custom_call.1} parent=11 // pred_fallthru
          _
        // Predicated region
        $region25: #{tpu_custom_call.1} parent=11 // pred_check
          %p280 = pneg %p132
        $region26: #{tpu_custom_call.1} parent=11 // pred_check_branch
          %282 = sbr.rel (%p280) target = $region28
        $region27: #{tpu_custom_call.1} parent=11 // pred_region
          %s283 = smul.u32 2, %s26
          %p284 = scmp.lt.s32.totalorder %s283, 1
          %s285 = scalar_select %p284, %s283, 1
          %s286 = smul.addr %s285, 8
          %s287 = scalar_lea.vmem %s3, %s286
          %s288 = smul.u32 2, %s26
        $region28: #{tpu_custom_call.1} parent=11 // pred_fallthru
          _
        // Predicated region
        $region29: #{tpu_custom_call.1} parent=11 // pred_check
          %p289 = pneg %p158
        $region30: #{tpu_custom_call.1} parent=11 // pred_check_branch
          %291 = sbr.rel (%p289) target = $region32
        $region31: #{tpu_custom_call.1} parent=11 // pred_region
          %s292 = smul.u32 2, %s26
          %p293 = scmp.lt.s32.totalorder %s292, 1
          %s294 = scalar_select %p293, %s292, 1
          %s295 = scalar_lea.vmem %s4, %s294
          %s296 = smul.u32 2, %s26
        $region32: #{tpu_custom_call.1} parent=11 // pred_fallthru
          _
      $region12: #{tpu_custom_call.1} parent=5 // pred_fallthru
        _
      %p297 = scmp.lt.s32.totalorder %s16, 2
      // Predicated region
      $region33: #{tpu_custom_call.1} parent=5 // pred_check
        %p298 = pneg %p297
      $region34: #{tpu_custom_call.1} parent=5 // pred_check_branch
        %300 = sbr.rel (%p298) target = $region36
      $region35: #{tpu_custom_call.1} parent=5 // pred_region
        // Predicated region
        $region37: #{tpu_custom_call.1} parent=35 // pred_check
          %p301 = pneg %p178
        $region38: #{tpu_custom_call.1} parent=35 // pred_check_branch
          %303 = sbr.rel (%p301) target = $region40
        $region39: #{tpu_custom_call.1} parent=35 // pred_region
          %p304 = scmp.lt.s32.totalorder %s23, 1
          %s305 = scalar_select %p304, %s23, 1
          %s306 = smul.addr %s305, 9
          %s307 = smul.addr %s306, 8
          %s308 = scalar_lea.vmem %s5, %s307
        $region40: #{tpu_custom_call.1} parent=35 // pred_fallthru
          _
        // Predicated region
        $region41: #{tpu_custom_call.1} parent=35 // pred_check
          %p309 = pneg %p204
        $region42: #{tpu_custom_call.1} parent=35 // pred_check_branch
          %311 = sbr.rel (%p309) target = $region44
        $region43: #{tpu_custom_call.1} parent=35 // pred_region
          %p312 = scmp.lt.s32.totalorder %s23, 1
          %s313 = scalar_select %p312, %s23, 1
          %s314 = smul.addr %s313, 4
          %s315 = scalar_lea.vmem %s6, %s314
        $region44: #{tpu_custom_call.1} parent=35 // pred_fallthru
          _
      $region36: #{tpu_custom_call.1} parent=5 // pred_fallthru
        _
      %p316 = scmp.le.s32.totalorder 1, %s16
      %p317 = scmp.lt.s32.totalorder %s16, 3
      %p318 = pnand %p316, %p317
      %p319 = pneg %p318
      // Predicated region
      $region45: #{tpu_custom_call.1} parent=5 // pred_check
        _
      $region46: #{tpu_custom_call.1} parent=5 // pred_check_branch
        %321 = sbr.rel (%p318) target = $region48
      $region47: #{tpu_custom_call.1} parent=5 // pred_region
        %s322 = ssub.s32 %s16, 1
        %s323 = smul.u32 2, %s26
        %p324 = scmp.lt.s32.totalorder %s323, 1
        %s325 = scalar_select %p324, %s323, 1
        %s326 = smul.addr %s325, 8
        %s327 = scalar_lea.vmem %s0, %s326
        %p328 = pneg %p54
        %p329 = pneg %p51
        %s330 = smul.u32 2, %s26
        %p331 = scmp.lt.s32.totalorder %s330, 1
        %s332 = scalar_select %p331, %s330, 1
        %s333 = smul.addr %s332, 8
        %s334 = scalar_lea.vmem %s1, %s333
        %p335 = pneg %p80
        %p336 = pneg %p77
        %s337 = smul.u32 2, %s26
        %p338 = scmp.lt.s32.totalorder %s337, 1
        %s339 = scalar_select %p338, %s337, 1
        %s340 = smul.addr %s339, 8
        %s341 = scalar_lea.vmem %s2, %s340
        %p342 = pneg %p106
        %p343 = pneg %p103
        %s344 = smul.u32 2, %s26
        %p345 = scmp.lt.s32.totalorder %s344, 1
        %s346 = scalar_select %p345, %s344, 1
        %s347 = smul.addr %s346, 8
        %s348 = scalar_lea.vmem %s3, %s347
        %p349 = pneg %p132
        %p350 = pneg %p129
        %s351 = smul.u32 2, %s26
        %p352 = scmp.lt.s32.totalorder %s351, 1
        %s353 = scalar_select %p352, %s351, 1
        %s354 = scalar_lea.vmem %s4, %s353
        %p355 = pneg %p158
        %p356 = pneg %p155
        %p357 = scmp.lt.s32.totalorder %s25, 1
        %s358 = scalar_select %p357, %s25, 1
        %s359 = smul.addr %s358, 9
        %s360 = smul.addr %s359, 8
        %s361 = scalar_lea.vmem %s5, %s360
        %p362 = pneg %p184
        %p363 = pneg %p181
        %p364 = scmp.lt.s32.totalorder %s25, 1
        %s365 = scalar_select %p364, %s25, 1
        %s366 = smul.addr %s365, 4
        %s367 = scalar_lea.vmem %s6, %s366
        %p368 = pneg %p210
        %p369 = pneg %p207
        %p370 = pneg %p238
        %p371 = pneg %p235
        %s372 = sand.u32 %s225, 1
        %s373 = scalar_lea.sflag [#allocation3], %s372
        %s374 = sand.u32 %s225, 1
        %s375 = smul.addr %s374, 2
        %s376 = scalar_lea.vmem [#allocation2], %s375
        %s377 = smul.u32 2, %s26
        %p378 = scmp.lt.s32.totalorder %s377, 1
        %s379 = scalar_select %p378, %s377, 1
        %s380 = smul.addr %s379, 8
        %s381 = scalar_lea.vmem %s0, %s380
        %s382 = smul.u32 2, %s26
        %s383 = smul.u32 2, %s26
        %p384 = scmp.lt.s32.totalorder %s383, 1
        %s385 = scalar_select %p384, %s383, 1
        %s386 = smul.addr %s385, 8
        %s387 = scalar_lea.vmem %s1, %s386
        %s388 = smul.u32 2, %s26
        %s389 = smul.u32 2, %s26
        %p390 = scmp.lt.s32.totalorder %s389, 1
        %s391 = scalar_select %p390, %s389, 1
        %s392 = smul.addr %s391, 8
        %s393 = scalar_lea.vmem %s2, %s392
        %s394 = smul.u32 2, %s26
        %s395 = smul.u32 2, %s26
        %p396 = scmp.lt.s32.totalorder %s395, 1
        %s397 = scalar_select %p396, %s395, 1
        %s398 = smul.addr %s397, 8
        %s399 = scalar_lea.vmem %s3, %s398
        %s400 = smul.u32 2, %s26
        %s401 = smul.u32 2, %s26
        %p402 = scmp.lt.s32.totalorder %s401, 1
        %s403 = scalar_select %p402, %s401, 1
        %s404 = scalar_lea.vmem %s4, %s403
        %s405 = smul.u32 2, %s26
        %p406 = scmp.lt.s32.totalorder %s25, 1
        %s407 = scalar_select %p406, %s25, 1
        %s408 = smul.addr %s407, 9
        %s409 = smul.addr %s408, 8
        %s410 = scalar_lea.vmem %s5, %s409
        %p411 = scmp.lt.s32.totalorder %s25, 1
        %s412 = scalar_select %p411, %s25, 1
        %s413 = smul.addr %s412, 4
        %s414 = scalar_lea.vmem %s6, %s413
        %v415 = vld [vmem:[%s381] sm:$0xff]
        %v416 = vld [vmem:[%s381 + $0x8] sm:$0xff]
        %v417 = vld [vmem:[%s387] sm:$0xff]
        %v418 = vld [vmem:[%s387 + $0x8] sm:$0xff]
        %v419 = vld [vmem:[%s393] sm:$0xff]
        %v420 = vld [vmem:[%s393 + $0x8] sm:$0xff]
        %v421 = vld [vmem:[%s399] sm:$0xff]
        %v422 = vld [vmem:[%s399 + $0x8] sm:$0xff]
        %v423 = vld [vmem:[%s404] sm:$0x1]
        %v424 = vld [vmem:[%s404 + $0x1] sm:$0x1]
        %v425 = vld [vmem:[%s410] sm:$0xff]
        %v426 = vld [vmem:[%s410 + $0x8] sm:$0xff]
        %v427 = vld [vmem:[%s410 + $0x10] sm:$0xff]
        %v428 = vld [vmem:[%s410 + $0x18] sm:$0xff]
        %v429 = vld [vmem:[%s410 + $0x20] sm:$0xff]
        %v430 = vld [vmem:[%s410 + $0x28] sm:$0xff]
        %v431 = vld [vmem:[%s410 + $0x30] sm:$0xff]
        %v432 = vld [vmem:[%s410 + $0x38] sm:$0xff]
        %v433 = vld [vmem:[%s410 + $0x40] sm:$0xff]
        %v434 = vld [vmem:[%s414] sm:$0x1]
        %v435 = vld [vmem:[%s414 + $0x1] sm:$0x1]
        %v436 = vld [vmem:[%s414 + $0x2] sm:$0x1]
        %v437 = vld [vmem:[%s414 + $0x3] sm:$0x1]
        %v438 = vperm.slane %v434, 0
        %vm439 = vcmask 261120
        %v441 = vsel %vm439, %v415, 0
        %v444 = vsel %vm439, %v416, 0
        %v447 = vsel %vm439, %v425, 0
        %v450 = vsel %vm439, %v426, 0
        %v453 = vsel %vm439, %v427, 0
        %v456 = vsel %vm439, %v428, 0
        %458 = vmatpush.xpose.msra.mxu0 0.0
        %459 = vmatpush.xpose.msra.mxu0 0.0
        %460 = vmatpush.xpose.msra.mxu0 0.0
        %461 = vmatpush.xpose.msra.mxu0 0.0
        %462 = vmatpush.xpose.msra.mxu0 0.0
        %463 = vmatpush.xpose.msra.mxu0 0.0
        %464 = vmatpush.xpose.msra.mxu0 0.0
        %465 = vmatpush.xpose.msra.mxu0 0.0
        %466 = vmatpush.xpose.msra.mxu0 0.0
        %467 = vmatpush.xpose.msra.mxu0 0.0
        %468 = vmatpush.xpose.msra.mxu0 0.0
        %469 = vmatpush.xpose.msra.mxu0 0.0
        %470 = vmatpush.xpose.msra.mxu0 %v456
        %471 = vmatpush.xpose.msra.mxu0 %v453
        %472 = vmatpush.xpose.msra.mxu0 %v450
        %473 = vmatpush.xpose.msra.mxu0 %v447
        %474 = vmatmul.f32.gmra.mxu0 %v441
        %v475 = vpop.f32.mrf.mxu0
        %v476 = vadd.f32 %v438, %v475
        %477 = vmatmul.f32.gmra.mxu0 %v444
        %v478 = vpop.f32.mrf.mxu0
        %v479 = vadd.f32 %v438, %v478
        %480 = vdwg.mxu0
        %v481 = vperm.slane %v435, 0
        %v483 = vsel %vm439, %v417, 0
        %v486 = vsel %vm439, %v418, 0
        %v489 = vsel %vm439, %v429, 0
        %v492 = vsel %vm439, %v430, 0
        %v495 = vsel %vm439, %v431, 0
        %v498 = vsel %vm439, %v432, 0
        %500 = vmatpush.xpose.msra.mxu0 0.0
        %501 = vmatpush.xpose.msra.mxu0 0.0
        %502 = vmatpush.xpose.msra.mxu0 0.0
        %503 = vmatpush.xpose.msra.mxu0 0.0
        %504 = vmatpush.xpose.msra.mxu0 0.0
        %505 = vmatpush.xpose.msra.mxu0 0.0
        %506 = vmatpush.xpose.msra.mxu0 0.0
        %507 = vmatpush.xpose.msra.mxu0 0.0
        %508 = vmatpush.xpose.msra.mxu0 0.0
        %509 = vmatpush.xpose.msra.mxu0 0.0
        %510 = vmatpush.xpose.msra.mxu0 0.0
        %511 = vmatpush.xpose.msra.mxu0 0.0
        %512 = vmatpush.xpose.msra.mxu0 %v498
        %513 = vmatpush.xpose.msra.mxu0 %v495
        %514 = vmatpush.xpose.msra.mxu0 %v492
        %515 = vmatpush.xpose.msra.mxu0 %v489
        %516 = vmatmul.f32.gmra.mxu0 %v483
        %v517 = vpop.f32.mrf.mxu0
        %v518 = vadd.f32 %v481, %v517
        %519 = vmatmul.f32.gmra.mxu0 %v486
        %v520 = vpop.f32.mrf.mxu0
        %v521 = vadd.f32 %v481, %v520
        %522 = vdwg.mxu0
        %v523 = vperm.slane %v436, 0
        %v525 = vsel %vm439, %v419, 0
        %v528 = vsel %vm439, %v420, 0
        %v531 = vsel %vm439, %v433, 0
        %533 = vmatpush.xpose.msra.mxu0 0.0
        %534 = vmatpush.xpose.msra.mxu0 0.0
        %535 = vmatpush.xpose.msra.mxu0 0.0
        %536 = vmatpush.xpose.msra.mxu0 0.0
        %537 = vmatpush.xpose.msra.mxu0 0.0
        %538 = vmatpush.xpose.msra.mxu0 0.0
        %539 = vmatpush.xpose.msra.mxu0 0.0
        %540 = vmatpush.xpose.msra.mxu0 0.0
        %541 = vmatpush.xpose.msra.mxu0 0.0
        %542 = vmatpush.xpose.msra.mxu0 0.0
        %543 = vmatpush.xpose.msra.mxu0 0.0
        %544 = vmatpush.xpose.msra.mxu0 0.0
        %545 = vmatpush.xpose.msra.mxu0 0.0
        %546 = vmatpush.xpose.msra.mxu0 0.0
        %547 = vmatpush.xpose.msra.mxu0 0.0
        %548 = vmatpush.xpose.msra.mxu0 %v531
        %549 = vmatmul.f32.gmra.mxu0 %v525
        %v550 = vpop.f32.mrf.mxu0
        %v551 = vadd.f32 %v523, %v550
        %552 = vmatmul.f32.gmra.mxu0 %v528
        %v553 = vpop.f32.mrf.mxu0
        %v554 = vadd.f32 %v523, %v553
        %555 = vdwg.mxu0
        %vm556 = vcmp.gt.f32.partialorder %v423, 0.5
        %vm557 = vcmp.gt.f32.partialorder %v424, 0.5
        %v558 = vsel %vm556, -1e+30, 0.0
        %v559 = vsel %vm557, -1e+30, 0.0
        %vm560 = vcmask 64512
        %v562 = vsel %vm560, %v476, 0
        %v565 = vsel %vm560, %v518, 0
        %567 = vmatpush.xpose.msra.mxu0 0.0
        %568 = vmatpush.xpose.msra.mxu0 0.0
        %569 = vmatpush.xpose.msra.mxu0 0.0
        %570 = vmatpush.xpose.msra.mxu0 0.0
        %571 = vmatpush.xpose.msra.mxu0 0.0
        %572 = vmatpush.xpose.msra.mxu0 0.0
        %573 = vmatpush.xpose.msra.mxu0 0.0
        %574 = vmatpush.xpose.msra.mxu0 0.0
        %575 = vmatpush.xpose.msra.mxu0 0.0
        %576 = vmatpush.xpose.msra.mxu0 0.0
        %577 = vmatpush.xpose.msra.mxu0 0.0
        %578 = vmatpush.xpose.msra.mxu0 0.0
        %579 = vmatpush.xpose.msra.mxu0 0.0
        %580 = vmatpush.xpose.msra.mxu0 0.0
        %581 = vmatpush.xpose.msra.mxu0 0.0
        %582 = vmatpush.xpose.msra.mxu0 %v565
        %583 = vmatmul.f32.gmra.mxu0 %v562
        %v584 = vpop.f32.mrf.mxu0
        %v585 = vadd.f32 0.0, %v584
        %586 = vdwg.mxu0
        %v588 = vsel %vm560, %v479, 0
        %v591 = vsel %vm560, %v521, 0
        %593 = vmatpush.xpose.msra.mxu0 0.0
        %594 = vmatpush.xpose.msra.mxu0 0.0
        %595 = vmatpush.xpose.msra.mxu0 0.0
        %596 = vmatpush.xpose.msra.mxu0 0.0
        %597 = vmatpush.xpose.msra.mxu0 0.0
        %598 = vmatpush.xpose.msra.mxu0 0.0
        %599 = vmatpush.xpose.msra.mxu0 0.0
        %600 = vmatpush.xpose.msra.mxu0 0.0
        %601 = vmatpush.xpose.msra.mxu0 0.0
        %602 = vmatpush.xpose.msra.mxu0 0.0
        %603 = vmatpush.xpose.msra.mxu0 0.0
        %604 = vmatpush.xpose.msra.mxu0 0.0
        %605 = vmatpush.xpose.msra.mxu0 0.0
        %606 = vmatpush.xpose.msra.mxu0 0.0
        %607 = vmatpush.xpose.msra.mxu0 0.0
        %608 = vmatpush.xpose.msra.mxu0 %v591
        %609 = vmatmul.f32.gmra.mxu0 %v588
        %v610 = vpop.f32.mrf.mxu0
        %v611 = vadd.f32 0.0, %v610
        %612 = vdwg.mxu0
        %v613 = vmul.f32 %v585, 0.35355338
        %v614 = vmul.f32 %v611, 0.35355338
        %v617 = vperm.slane %v558, 0
        %v618 = vperm.slane %v559, 0
        %v621 = vadd.f32 %v613, %v617
        %v622 = vadd.f32 %v614, %v618
        %v623 = vsel %vm560, %v621, -inf
        %624 = vmax.xlane.f32.xlu0 %v623
        %v625 = vpop.xlane.xlu0 %624
        %v626 = vsel %vm560, %v622, -inf
        %627 = vmax.xlane.f32.xlu0 %v626
        %v628 = vpop.xlane.xlu0 %627
        %v629 = vsub.f32 %v621, %v625
        %v630 = vsub.f32 %v622, %v628
        %v631 = vmul.f32 %v629, 1.442695
        %v632 = vpow.pop %v631
        %v633 = vmul.f32 %v630, 1.442695
        %v634 = vpow.pop %v633
        %v635 = vsel %vm560, %v632, 0.0
        %636 = vadd.xlane.f32.xlu0 %v635
        %v637 = vpop.xlane.xlu0 %636
        %v638 = vsel %vm560, %v634, 0.0
        %639 = vadd.xlane.f32.xlu0 %v638
        %v640 = vpop.xlane.xlu0 %639
        %v642 = vsel %vm560, %v632, 0
        %644 = vmatpush.msra.mxu0 0.0
        %645 = vmatpush.msra.mxu0 0.0
        %646 = vmatpush.msra.mxu0 0.0
        %647 = vmatpush.msra.mxu0 0.0
        %648 = vmatpush.msra.mxu0 0.0
        %649 = vmatpush.msra.mxu0 0.0
        %650 = vmatpush.msra.mxu0 0.0
        %651 = vmatpush.msra.mxu0 0.0
        %652 = vmatpush.msra.mxu0 0.0
        %653 = vmatpush.msra.mxu0 0.0
        %654 = vmatpush.msra.mxu0 0.0
        %655 = vmatpush.msra.mxu0 0.0
        %656 = vmatpush.msra.mxu0 0.0
        %657 = vmatpush.msra.mxu0 0.0
        %658 = vmatpush.msra.mxu0 0.0
        %659 = vmatpush.msra.mxu0 %v551
        %660 = vmatmul.f32.gmra.mxu0 %v642
        %v661 = vpop.f32.mrf.mxu0
        %v662 = vadd.f32 0.0, %v661
        %663 = vdwg.mxu0
        %v665 = vsel %vm560, %v634, 0
        %667 = vmatpush.msra.mxu0 0.0
        %668 = vmatpush.msra.mxu0 0.0
        %669 = vmatpush.msra.mxu0 0.0
        %670 = vmatpush.msra.mxu0 0.0
        %671 = vmatpush.msra.mxu0 0.0
        %672 = vmatpush.msra.mxu0 0.0
        %673 = vmatpush.msra.mxu0 0.0
        %674 = vmatpush.msra.mxu0 0.0
        %675 = vmatpush.msra.mxu0 0.0
        %676 = vmatpush.msra.mxu0 0.0
        %677 = vmatpush.msra.mxu0 0.0
        %678 = vmatpush.msra.mxu0 0.0
        %679 = vmatpush.msra.mxu0 0.0
        %680 = vmatpush.msra.mxu0 0.0
        %681 = vmatpush.msra.mxu0 0.0
        %682 = vmatpush.msra.mxu0 %v554
        %683 = vmatmul.f32.gmra.mxu0 %v665
        %v684 = vpop.f32.mrf.mxu0
        %v685 = vadd.f32 0.0, %v684
        %686 = vdwg.mxu0
        %v687 = vrcp.pop %v637
        %v688 = vmul.f32 %v637, %v687
        %v689 = vsub.f32 1.0, %v688
        %v690 = vmul.f32 %v687, %v689
        %v691 = vadd.f32 %v687, %v690
        %vm692 = vweird.f32 %v637
        %vm693 = vweird.f32 %v687
        %vm694 = vmor %vm692, %vm693
        %v695 = vsel %vm694, %v687, %v691
        %v696 = vand.u32 2147483647, %v637
        %vm697 = vcmp.eq.f32.partialorder %v696, 8.507059e+37
        %v698 = vand.u32 %v637, 2147483648
        %v699 = vor.u32 1.1754944e-38, %v698
        %v700 = vsel %vm697, %v699, %v695
        %v701 = vrcp.pop %v640
        %v702 = vmul.f32 %v640, %v701
        %v703 = vsub.f32 1.0, %v702
        %v704 = vmul.f32 %v701, %v703
        %v705 = vadd.f32 %v701, %v704
        %vm706 = vweird.f32 %v640
        %vm707 = vweird.f32 %v701
        %vm708 = vmor %vm706, %vm707
        %v709 = vsel %vm708, %v701, %v705
        %v710 = vand.u32 2147483647, %v640
        %vm711 = vcmp.eq.f32.partialorder %v710, 8.507059e+37
        %v712 = vand.u32 %v640, 2147483648
        %v713 = vor.u32 1.1754944e-38, %v712
        %v714 = vsel %vm711, %v713, %v709
        %v715 = vmul.f32 %v662, %v700
        %v716 = vmul.f32 %v685, %v714
        %717 = vrot.lane.b32.xlu0 %v476, 120
        %v718 = vpop.permute.xlu0 %717
        %719 = vrot.lane.b32.xlu0 %v518, 120
        %v720 = vpop.permute.xlu0 %719
        %v721 = vsel %vm560, %v718, 0
        %v723 = vsel %vm560, %v720, 0
        %725 = vmatpush.xpose.msra.mxu0 0.0
        %726 = vmatpush.xpose.msra.mxu0 0.0
        %727 = vmatpush.xpose.msra.mxu0 0.0
        %728 = vmatpush.xpose.msra.mxu0 0.0
        %729 = vmatpush.xpose.msra.mxu0 0.0
        %730 = vmatpush.xpose.msra.mxu0 0.0
        %731 = vmatpush.xpose.msra.mxu0 0.0
        %732 = vmatpush.xpose.msra.mxu0 0.0
        %733 = vmatpush.xpose.msra.mxu0 0.0
        %734 = vmatpush.xpose.msra.mxu0 0.0
        %735 = vmatpush.xpose.msra.mxu0 0.0
        %736 = vmatpush.xpose.msra.mxu0 0.0
        %737 = vmatpush.xpose.msra.mxu0 0.0
        %738 = vmatpush.xpose.msra.mxu0 0.0
        %739 = vmatpush.xpose.msra.mxu0 0.0
        %740 = vmatpush.xpose.msra.mxu0 %v723
        %741 = vmatmul.f32.gmra.mxu0 %v721
        %v742 = vpop.f32.mrf.mxu0
        %v743 = vadd.f32 0.0, %v742
        %744 = vdwg.mxu0
        %745 = vrot.lane.b32.xlu0 %v479, 120
        %v746 = vpop.permute.xlu0 %745
        %747 = vrot.lane.b32.xlu0 %v521, 120
        %v748 = vpop.permute.xlu0 %747
        %v749 = vsel %vm560, %v746, 0
        %v751 = vsel %vm560, %v748, 0
        %753 = vmatpush.xpose.msra.mxu0 0.0
        %754 = vmatpush.xpose.msra.mxu0 0.0
        %755 = vmatpush.xpose.msra.mxu0 0.0
        %756 = vmatpush.xpose.msra.mxu0 0.0
        %757 = vmatpush.xpose.msra.mxu0 0.0
        %758 = vmatpush.xpose.msra.mxu0 0.0
        %759 = vmatpush.xpose.msra.mxu0 0.0
        %760 = vmatpush.xpose.msra.mxu0 0.0
        %761 = vmatpush.xpose.msra.mxu0 0.0
        %762 = vmatpush.xpose.msra.mxu0 0.0
        %763 = vmatpush.xpose.msra.mxu0 0.0
        %764 = vmatpush.xpose.msra.mxu0 0.0
        %765 = vmatpush.xpose.msra.mxu0 0.0
        %766 = vmatpush.xpose.msra.mxu0 0.0
        %767 = vmatpush.xpose.msra.mxu0 0.0
        %768 = vmatpush.xpose.msra.mxu0 %v751
        %769 = vmatmul.f32.gmra.mxu0 %v749
        %v770 = vpop.f32.mrf.mxu0
        %v771 = vadd.f32 0.0, %v770
        %772 = vdwg.mxu0
        %v773 = vmul.f32 %v743, 0.35355338
        %v774 = vmul.f32 %v771, 0.35355338
        %v775 = vadd.f32 %v773, %v617
        %v776 = vadd.f32 %v774, %v618
        %v777 = vsel %vm560, %v775, -inf
        %778 = vmax.xlane.f32.xlu0 %v777
        %v779 = vpop.xlane.xlu0 %778
        %v780 = vsel %vm560, %v776, -inf
        %781 = vmax.xlane.f32.xlu0 %v780
        %v782 = vpop.xlane.xlu0 %781
        %v783 = vsub.f32 %v775, %v779
        %v784 = vsub.f32 %v776, %v782
        %v785 = vmul.f32 %v783, 1.442695
        %v786 = vpow.pop %v785
        %v787 = vmul.f32 %v784, 1.442695
        %v788 = vpow.pop %v787
        %v789 = vsel %vm560, %v786, 0.0
        %790 = vadd.xlane.f32.xlu0 %v789
        %v791 = vpop.xlane.xlu0 %790
        %v792 = vsel %vm560, %v788, 0.0
        %793 = vadd.xlane.f32.xlu0 %v792
        %v794 = vpop.xlane.xlu0 %793
        %796 = vrot.lane.b32.xlu0 %v551, 127
        %v797 = vpop.permute.xlu0 %796
        %v800 = vsel %vm560, %v786, 0
        %802 = vmatpush.msra.mxu0 0.0
        %803 = vmatpush.msra.mxu0 0.0
        %804 = vmatpush.msra.mxu0 0.0
        %805 = vmatpush.msra.mxu0 0.0
        %806 = vmatpush.msra.mxu0 0.0
        %807 = vmatpush.msra.mxu0 0.0
        %808 = vmatpush.msra.mxu0 0.0
        %809 = vmatpush.msra.mxu0 0.0
        %810 = vmatpush.msra.mxu0 0.0
        %811 = vmatpush.msra.mxu0 0.0
        %812 = vmatpush.msra.mxu0 0.0
        %813 = vmatpush.msra.mxu0 0.0
        %814 = vmatpush.msra.mxu0 0.0
        %815 = vmatpush.msra.mxu0 0.0
        %816 = vmatpush.msra.mxu0 0.0
        %817 = vmatpush.msra.mxu0 %v797
        %818 = vmatmul.f32.gmra.mxu0 %v800
        %v819 = vpop.f32.mrf.mxu0
        %v820 = vadd.f32 0.0, %v819
        %821 = vdwg.mxu0
        %823 = vrot.lane.b32.xlu0 %v554, 127
        %v824 = vpop.permute.xlu0 %823
        %v827 = vsel %vm560, %v788, 0
        %829 = vmatpush.msra.mxu0 0.0
        %830 = vmatpush.msra.mxu0 0.0
        %831 = vmatpush.msra.mxu0 0.0
        %832 = vmatpush.msra.mxu0 0.0
        %833 = vmatpush.msra.mxu0 0.0
        %834 = vmatpush.msra.mxu0 0.0
        %835 = vmatpush.msra.mxu0 0.0
        %836 = vmatpush.msra.mxu0 0.0
        %837 = vmatpush.msra.mxu0 0.0
        %838 = vmatpush.msra.mxu0 0.0
        %839 = vmatpush.msra.mxu0 0.0
        %840 = vmatpush.msra.mxu0 0.0
        %841 = vmatpush.msra.mxu0 0.0
        %842 = vmatpush.msra.mxu0 0.0
        %843 = vmatpush.msra.mxu0 0.0
        %844 = vmatpush.msra.mxu0 %v824
        %845 = vmatmul.f32.gmra.mxu0 %v827
        %v846 = vpop.f32.mrf.mxu0
        %v847 = vadd.f32 0.0, %v846
        %848 = vdwg.mxu0
        %v849 = vrcp.pop %v791
        %v850 = vmul.f32 %v791, %v849
        %v851 = vsub.f32 1.0, %v850
        %v852 = vmul.f32 %v849, %v851
        %v853 = vadd.f32 %v849, %v852
        %vm854 = vweird.f32 %v791
        %vm855 = vweird.f32 %v849
        %vm856 = vmor %vm854, %vm855
        %v857 = vsel %vm856, %v849, %v853
        %v858 = vand.u32 2147483647, %v791
        %vm859 = vcmp.eq.f32.partialorder %v858, 8.507059e+37
        %v860 = vand.u32 %v791, 2147483648
        %v861 = vor.u32 1.1754944e-38, %v860
        %v862 = vsel %vm859, %v861, %v857
        %v863 = vrcp.pop %v794
        %v864 = vmul.f32 %v794, %v863
        %v865 = vsub.f32 1.0, %v864
        %v866 = vmul.f32 %v863, %v865
        %v867 = vadd.f32 %v863, %v866
        %vm868 = vweird.f32 %v794
        %vm869 = vweird.f32 %v863
        %vm870 = vmor %vm868, %vm869
        %v871 = vsel %vm870, %v863, %v867
        %v872 = vand.u32 2147483647, %v794
        %vm873 = vcmp.eq.f32.partialorder %v872, 8.507059e+37
        %v874 = vand.u32 %v794, 2147483648
        %v875 = vor.u32 1.1754944e-38, %v874
        %v876 = vsel %vm873, %v875, %v871
        %v877 = vmul.f32 %v820, %v862
        %v878 = vmul.f32 %v847, %v876
        %v879 = vadd.f32 %v715, %v877
        %v880 = vadd.f32 %v716, %v878
        %881 = vrot.lane.b32.xlu0 %v476, 112
        %v882 = vpop.permute.xlu0 %881
        %883 = vrot.lane.b32.xlu0 %v518, 112
        %v884 = vpop.permute.xlu0 %883
        %v885 = vsel %vm560, %v882, 0
        %v887 = vsel %vm560, %v884, 0
        %889 = vmatpush.xpose.msra.mxu0 0.0
        %890 = vmatpush.xpose.msra.mxu0 0.0
        %891 = vmatpush.xpose.msra.mxu0 0.0
        %892 = vmatpush.xpose.msra.mxu0 0.0
        %893 = vmatpush.xpose.msra.mxu0 0.0
        %894 = vmatpush.xpose.msra.mxu0 0.0
        %895 = vmatpush.xpose.msra.mxu0 0.0
        %896 = vmatpush.xpose.msra.mxu0 0.0
        %897 = vmatpush.xpose.msra.mxu0 0.0
        %898 = vmatpush.xpose.msra.mxu0 0.0
        %899 = vmatpush.xpose.msra.mxu0 0.0
        %900 = vmatpush.xpose.msra.mxu0 0.0
        %901 = vmatpush.xpose.msra.mxu0 0.0
        %902 = vmatpush.xpose.msra.mxu0 0.0
        %903 = vmatpush.xpose.msra.mxu0 0.0
        %904 = vmatpush.xpose.msra.mxu0 %v887
        %905 = vmatmul.f32.gmra.mxu0 %v885
        %v906 = vpop.f32.mrf.mxu0
        %v907 = vadd.f32 0.0, %v906
        %908 = vdwg.mxu0
        %909 = vrot.lane.b32.xlu0 %v479, 112
        %v910 = vpop.permute.xlu0 %909
        %911 = vrot.lane.b32.xlu0 %v521, 112
        %v912 = vpop.permute.xlu0 %911
        %v913 = vsel %vm560, %v910, 0
        %v915 = vsel %vm560, %v912, 0
        %917 = vmatpush.xpose.msra.mxu0 0.0
        %918 = vmatpush.xpose.msra.mxu0 0.0
        %919 = vmatpush.xpose.msra.mxu0 0.0
        %920 = vmatpush.xpose.msra.mxu0 0.0
        %921 = vmatpush.xpose.msra.mxu0 0.0
        %922 = vmatpush.xpose.msra.mxu0 0.0
        %923 = vmatpush.xpose.msra.mxu0 0.0
        %924 = vmatpush.xpose.msra.mxu0 0.0
        %925 = vmatpush.xpose.msra.mxu0 0.0
        %926 = vmatpush.xpose.msra.mxu0 0.0
        %927 = vmatpush.xpose.msra.mxu0 0.0
        %928 = vmatpush.xpose.msra.mxu0 0.0
        %929 = vmatpush.xpose.msra.mxu0 0.0
        %930 = vmatpush.xpose.msra.mxu0 0.0
        %931 = vmatpush.xpose.msra.mxu0 0.0
        %932 = vmatpush.xpose.msra.mxu0 %v915
        %933 = vmatmul.f32.gmra.mxu0 %v913
        %v934 = vpop.f32.mrf.mxu0
        %v935 = vadd.f32 0.0, %v934
        %936 = vdwg.mxu0
        %v937 = vmul.f32 %v907, 0.35355338
        %v938 = vmul.f32 %v935, 0.35355338
        %v939 = vadd.f32 %v937, %v617
        %v940 = vadd.f32 %v938, %v618
        %v941 = vsel %vm560, %v939, -inf
        %942 = vmax.xlane.f32.xlu0 %v941
        %v943 = vpop.xlane.xlu0 %942
        %v944 = vsel %vm560, %v940, -inf
        %945 = vmax.xlane.f32.xlu0 %v944
        %v946 = vpop.xlane.xlu0 %945
        %v947 = vsub.f32 %v939, %v943
        %v948 = vsub.f32 %v940, %v946
        %v949 = vmul.f32 %v947, 1.442695
        %v950 = vpow.pop %v949
        %v951 = vmul.f32 %v948, 1.442695
        %v952 = vpow.pop %v951
        %v953 = vsel %vm560, %v950, 0.0
        %954 = vadd.xlane.f32.xlu0 %v953
        %v955 = vpop.xlane.xlu0 %954
        %v956 = vsel %vm560, %v952, 0.0
        %957 = vadd.xlane.f32.xlu0 %v956
        %v958 = vpop.xlane.xlu0 %957
        %959 = vrot.lane.b32.xlu0 %v551, 126
        %v960 = vpop.permute.xlu0 %959
        %v963 = vsel %vm560, %v950, 0
        %965 = vmatpush.msra.mxu0 0.0
        %966 = vmatpush.msra.mxu0 0.0
        %967 = vmatpush.msra.mxu0 0.0
        %968 = vmatpush.msra.mxu0 0.0
        %969 = vmatpush.msra.mxu0 0.0
        %970 = vmatpush.msra.mxu0 0.0
        %971 = vmatpush.msra.mxu0 0.0
        %972 = vmatpush.msra.mxu0 0.0
        %973 = vmatpush.msra.mxu0 0.0
        %974 = vmatpush.msra.mxu0 0.0
        %975 = vmatpush.msra.mxu0 0.0
        %976 = vmatpush.msra.mxu0 0.0
        %977 = vmatpush.msra.mxu0 0.0
        %978 = vmatpush.msra.mxu0 0.0
        %979 = vmatpush.msra.mxu0 0.0
        %980 = vmatpush.msra.mxu0 %v960
        %981 = vmatmul.f32.gmra.mxu0 %v963
        %v982 = vpop.f32.mrf.mxu0
        %v983 = vadd.f32 0.0, %v982
        %984 = vdwg.mxu0
        %985 = vrot.lane.b32.xlu0 %v554, 126
        %v986 = vpop.permute.xlu0 %985
        %v989 = vsel %vm560, %v952, 0
        %991 = vmatpush.msra.mxu0 0.0
        %992 = vmatpush.msra.mxu0 0.0
        %993 = vmatpush.msra.mxu0 0.0
        %994 = vmatpush.msra.mxu0 0.0
        %995 = vmatpush.msra.mxu0 0.0
        %996 = vmatpush.msra.mxu0 0.0
        %997 = vmatpush.msra.mxu0 0.0
        %998 = vmatpush.msra.mxu0 0.0
        %999 = vmatpush.msra.mxu0 0.0
        %1000 = vmatpush.msra.mxu0 0.0
        %1001 = vmatpush.msra.mxu0 0.0
        %1002 = vmatpush.msra.mxu0 0.0
        %1003 = vmatpush.msra.mxu0 0.0
        %1004 = vmatpush.msra.mxu0 0.0
        %1005 = vmatpush.msra.mxu0 0.0
        %1006 = vmatpush.msra.mxu0 %v986
        %1007 = vmatmul.f32.gmra.mxu0 %v989
        %v1008 = vpop.f32.mrf.mxu0
        %v1009 = vadd.f32 0.0, %v1008
        %1010 = vdwg.mxu0
        %v1011 = vrcp.pop %v955
        %v1012 = vmul.f32 %v955, %v1011
        %v1013 = vsub.f32 1.0, %v1012
        %v1014 = vmul.f32 %v1011, %v1013
        %v1015 = vadd.f32 %v1011, %v1014
        %vm1016 = vweird.f32 %v955
        %vm1017 = vweird.f32 %v1011
        %vm1018 = vmor %vm1016, %vm1017
        %v1019 = vsel %vm1018, %v1011, %v1015
        %v1020 = vand.u32 2147483647, %v955
        %vm1021 = vcmp.eq.f32.partialorder %v1020, 8.507059e+37
        %v1022 = vand.u32 %v955, 2147483648
        %v1023 = vor.u32 1.1754944e-38, %v1022
        %v1024 = vsel %vm1021, %v1023, %v1019
        %v1025 = vrcp.pop %v958
        %v1026 = vmul.f32 %v958, %v1025
        %v1027 = vsub.f32 1.0, %v1026
        %v1028 = vmul.f32 %v1025, %v1027
        %v1029 = vadd.f32 %v1025, %v1028
        %vm1030 = vweird.f32 %v958
        %vm1031 = vweird.f32 %v1025
        %vm1032 = vmor %vm1030, %vm1031
        %v1033 = vsel %vm1032, %v1025, %v1029
        %v1034 = vand.u32 2147483647, %v958
        %vm1035 = vcmp.eq.f32.partialorder %v1034, 8.507059e+37
        %v1036 = vand.u32 %v958, 2147483648
        %v1037 = vor.u32 1.1754944e-38, %v1036
        %v1038 = vsel %vm1035, %v1037, %v1033
        %v1039 = vmul.f32 %v983, %v1024
        %v1040 = vmul.f32 %v1009, %v1038
        %v1041 = vadd.f32 %v879, %v1039
        %v1042 = vadd.f32 %v880, %v1040
        %1043 = vrot.lane.b32.xlu0 %v476, 104
        %v1044 = vpop.permute.xlu0 %1043
        %1045 = vrot.lane.b32.xlu0 %v518, 104
        %v1046 = vpop.permute.xlu0 %1045
        %v1047 = vsel %vm560, %v1044, 0
        %v1049 = vsel %vm560, %v1046, 0
        %1051 = vmatpush.xpose.msra.mxu0 0.0
        %1052 = vmatpush.xpose.msra.mxu0 0.0
        %1053 = vmatpush.xpose.msra.mxu0 0.0
        %1054 = vmatpush.xpose.msra.mxu0 0.0
        %1055 = vmatpush.xpose.msra.mxu0 0.0
        %1056 = vmatpush.xpose.msra.mxu0 0.0
        %1057 = vmatpush.xpose.msra.mxu0 0.0
        %1058 = vmatpush.xpose.msra.mxu0 0.0
        %1059 = vmatpush.xpose.msra.mxu0 0.0
        %1060 = vmatpush.xpose.msra.mxu0 0.0
        %1061 = vmatpush.xpose.msra.mxu0 0.0
        %1062 = vmatpush.xpose.msra.mxu0 0.0
        %1063 = vmatpush.xpose.msra.mxu0 0.0
        %1064 = vmatpush.xpose.msra.mxu0 0.0
        %1065 = vmatpush.xpose.msra.mxu0 0.0
        %1066 = vmatpush.xpose.msra.mxu0 %v1049
        %1067 = vmatmul.f32.gmra.mxu0 %v1047
        %v1068 = vpop.f32.mrf.mxu0
        %v1069 = vadd.f32 0.0, %v1068
        %1070 = vdwg.mxu0
        %1071 = vrot.lane.b32.xlu0 %v479, 104
        %v1072 = vpop.permute.xlu0 %1071
        %1073 = vrot.lane.b32.xlu0 %v521, 104
        %v1074 = vpop.permute.xlu0 %1073
        %v1075 = vsel %vm560, %v1072, 0
        %v1077 = vsel %vm560, %v1074, 0
        %1079 = vmatpush.xpose.msra.mxu0 0.0
        %1080 = vmatpush.xpose.msra.mxu0 0.0
        %1081 = vmatpush.xpose.msra.mxu0 0.0
        %1082 = vmatpush.xpose.msra.mxu0 0.0
        %1083 = vmatpush.xpose.msra.mxu0 0.0
        %1084 = vmatpush.xpose.msra.mxu0 0.0
        %1085 = vmatpush.xpose.msra.mxu0 0.0
        %1086 = vmatpush.xpose.msra.mxu0 0.0
        %1087 = vmatpush.xpose.msra.mxu0 0.0
        %1088 = vmatpush.xpose.msra.mxu0 0.0
        %1089 = vmatpush.xpose.msra.mxu0 0.0
        %1090 = vmatpush.xpose.msra.mxu0 0.0
        %1091 = vmatpush.xpose.msra.mxu0 0.0
        %1092 = vmatpush.xpose.msra.mxu0 0.0
        %1093 = vmatpush.xpose.msra.mxu0 0.0
        %1094 = vmatpush.xpose.msra.mxu0 %v1077
        %1095 = vmatmul.f32.gmra.mxu0 %v1075
        %v1096 = vpop.f32.mrf.mxu0
        %v1097 = vadd.f32 0.0, %v1096
        %1098 = vdwg.mxu0
        %v1099 = vmul.f32 %v1069, 0.35355338
        %v1100 = vmul.f32 %v1097, 0.35355338
        %v1101 = vadd.f32 %v1099, %v617
        %v1102 = vadd.f32 %v1100, %v618
        %v1103 = vsel %vm560, %v1101, -inf
        %1104 = vmax.xlane.f32.xlu0 %v1103
        %v1105 = vpop.xlane.xlu0 %1104
        %v1106 = vsel %vm560, %v1102, -inf
        %1107 = vmax.xlane.f32.xlu0 %v1106
        %v1108 = vpop.xlane.xlu0 %1107
        %v1109 = vsub.f32 %v1101, %v1105
        %v1110 = vsub.f32 %v1102, %v1108
        %v1111 = vmul.f32 %v1109, 1.442695
        %v1112 = vpow.pop %v1111
        %v1113 = vmul.f32 %v1110, 1.442695
        %v1114 = vpow.pop %v1113
        %v1115 = vsel %vm560, %v1112, 0.0
        %1116 = vadd.xlane.f32.xlu0 %v1115
        %v1117 = vpop.xlane.xlu0 %1116
        %v1118 = vsel %vm560, %v1114, 0.0
        %1119 = vadd.xlane.f32.xlu0 %v1118
        %v1120 = vpop.xlane.xlu0 %1119
        %1121 = vrot.lane.b32.xlu0 %v551, 125
        %v1122 = vpop.permute.xlu0 %1121
        %v1125 = vsel %vm560, %v1112, 0
        %1127 = vmatpush.msra.mxu0 0.0
        %1128 = vmatpush.msra.mxu0 0.0
        %1129 = vmatpush.msra.mxu0 0.0
        %1130 = vmatpush.msra.mxu0 0.0
        %1131 = vmatpush.msra.mxu0 0.0
        %1132 = vmatpush.msra.mxu0 0.0
        %1133 = vmatpush.msra.mxu0 0.0
        %1134 = vmatpush.msra.mxu0 0.0
        %1135 = vmatpush.msra.mxu0 0.0
        %1136 = vmatpush.msra.mxu0 0.0
        %1137 = vmatpush.msra.mxu0 0.0
        %1138 = vmatpush.msra.mxu0 0.0
        %1139 = vmatpush.msra.mxu0 0.0
        %1140 = vmatpush.msra.mxu0 0.0
        %1141 = vmatpush.msra.mxu0 0.0
        %1142 = vmatpush.msra.mxu0 %v1122
        %1143 = vmatmul.f32.gmra.mxu0 %v1125
        %v1144 = vpop.f32.mrf.mxu0
        %v1145 = vadd.f32 0.0, %v1144
        %1146 = vdwg.mxu0
        %1147 = vrot.lane.b32.xlu0 %v554, 125
        %v1148 = vpop.permute.xlu0 %1147
        %v1151 = vsel %vm560, %v1114, 0
        %1153 = vmatpush.msra.mxu0 0.0
        %1154 = vmatpush.msra.mxu0 0.0
        %1155 = vmatpush.msra.mxu0 0.0
        %1156 = vmatpush.msra.mxu0 0.0
        %1157 = vmatpush.msra.mxu0 0.0
        %1158 = vmatpush.msra.mxu0 0.0
        %1159 = vmatpush.msra.mxu0 0.0
        %1160 = vmatpush.msra.mxu0 0.0
        %1161 = vmatpush.msra.mxu0 0.0
        %1162 = vmatpush.msra.mxu0 0.0
        %1163 = vmatpush.msra.mxu0 0.0
        %1164 = vmatpush.msra.mxu0 0.0
        %1165 = vmatpush.msra.mxu0 0.0
        %1166 = vmatpush.msra.mxu0 0.0
        %1167 = vmatpush.msra.mxu0 0.0
        %1168 = vmatpush.msra.mxu0 %v1148
        %1169 = vmatmul.f32.gmra.mxu0 %v1151
        %v1170 = vpop.f32.mrf.mxu0
        %v1171 = vadd.f32 0.0, %v1170
        %1172 = vdwg.mxu0
        %v1173 = vrcp.pop %v1117
        %v1174 = vmul.f32 %v1117, %v1173
        %v1175 = vsub.f32 1.0, %v1174
        %v1176 = vmul.f32 %v1173, %v1175
        %v1177 = vadd.f32 %v1173, %v1176
        %vm1178 = vweird.f32 %v1117
        %vm1179 = vweird.f32 %v1173
        %vm1180 = vmor %vm1178, %vm1179
        %v1181 = vsel %vm1180, %v1173, %v1177
        %v1182 = vand.u32 2147483647, %v1117
        %vm1183 = vcmp.eq.f32.partialorder %v1182, 8.507059e+37
        %v1184 = vand.u32 %v1117, 2147483648
        %v1185 = vor.u32 1.1754944e-38, %v1184
        %v1186 = vsel %vm1183, %v1185, %v1181
        %v1187 = vrcp.pop %v1120
        %v1188 = vmul.f32 %v1120, %v1187
        %v1189 = vsub.f32 1.0, %v1188
        %v1190 = vmul.f32 %v1187, %v1189
        %v1191 = vadd.f32 %v1187, %v1190
        %vm1192 = vweird.f32 %v1120
        %vm1193 = vweird.f32 %v1187
        %vm1194 = vmor %vm1192, %vm1193
        %v1195 = vsel %vm1194, %v1187, %v1191
        %v1196 = vand.u32 2147483647, %v1120
        %vm1197 = vcmp.eq.f32.partialorder %v1196, 8.507059e+37
        %v1198 = vand.u32 %v1120, 2147483648
        %v1199 = vor.u32 1.1754944e-38, %v1198
        %v1200 = vsel %vm1197, %v1199, %v1195
        %v1201 = vmul.f32 %v1145, %v1186
        %v1202 = vmul.f32 %v1171, %v1200
        %v1203 = vadd.f32 %v1041, %v1201
        %v1204 = vadd.f32 %v1042, %v1202
        %v1205 = vperm.slane %v437, 0
        %v1206 = vadd.f32 %v1203, %v1205
        %v1207 = vadd.f32 %v1204, %v1205
        %vm1208 = vcmp.gt.f32.partialorder %v421, 0.5
        %vm1209 = vcmp.gt.f32.partialorder %v422, 0.5
        %v1210 = vsel %vm1208, -1e+30, %v1206
        %v1211 = vsel %vm1209, -1e+30, %v1207
        %vm1212 = vcmask 7168
        %v1213 = vsel %vm1212, %v1210, -inf
        %v1214 = vrot.slane %v1213, 4
        %v1215 = vmax.f32 %v1213, %v1214
        %v1216 = vrot.slane %v1215, 2
        %v1217 = vmax.f32 %v1215, %v1216
        %v1218 = vrot.slane %v1217, 1
        %v1219 = vmax.f32 %v1217, %v1218
        %v1220 = vsel %vm1212, %v1211, -inf
        %v1221 = vrot.slane %v1220, 4
        %v1222 = vmax.f32 %v1220, %v1221
        %v1223 = vrot.slane %v1222, 2
        %v1224 = vmax.f32 %v1222, %v1223
        %v1225 = vrot.slane %v1224, 1
        %v1226 = vmax.f32 %v1224, %v1225
        %v1227 = vsub.f32 %v1210, %v1219
        %v1228 = vsub.f32 %v1211, %v1226
        %v1229 = vmul.f32 %v1227, 1.442695
        %v1230 = vpow.pop %v1229
        %v1231 = vmul.f32 %v1228, 1.442695
        %v1232 = vpow.pop %v1231
        %v1233 = vsel %vm1212, %v1230, 0.0
        %v1234 = vrot.slane %v1233, 4
        %v1235 = vadd.f32 %v1233, %v1234
        %v1236 = vrot.slane %v1235, 2
        %v1237 = vadd.f32 %v1235, %v1236
        %v1238 = vrot.slane %v1237, 1
        %v1239 = vadd.f32 %v1237, %v1238
        %v1240 = vsel %vm1212, %v1232, 0.0
        %v1241 = vrot.slane %v1240, 4
        %v1242 = vadd.f32 %v1240, %v1241
        %v1243 = vrot.slane %v1242, 2
        %v1244 = vadd.f32 %v1242, %v1243
        %v1245 = vrot.slane %v1244, 1
        %v1246 = vadd.f32 %v1244, %v1245
        %v1247 = vrcp.pop %v1239
        %v1248 = vmul.f32 %v1239, %v1247
        %v1249 = vsub.f32 1.0, %v1248
        %v1250 = vmul.f32 %v1247, %v1249
        %v1251 = vadd.f32 %v1247, %v1250
        %vm1252 = vweird.f32 %v1239
        %vm1253 = vweird.f32 %v1247
        %vm1254 = vmor %vm1252, %vm1253
        %v1255 = vsel %vm1254, %v1247, %v1251
        %v1256 = vand.u32 2147483647, %v1239
        %vm1257 = vcmp.eq.f32.partialorder %v1256, 8.507059e+37
        %v1258 = vand.u32 %v1239, 2147483648
        %v1259 = vor.u32 1.1754944e-38, %v1258
        %v1260 = vsel %vm1257, %v1259, %v1255
        %v1261 = vrcp.pop %v1246
        %v1262 = vmul.f32 %v1246, %v1261
        %v1263 = vsub.f32 1.0, %v1262
        %v1264 = vmul.f32 %v1261, %v1263
        %v1265 = vadd.f32 %v1261, %v1264
        %vm1266 = vweird.f32 %v1246
        %vm1267 = vweird.f32 %v1261
        %vm1268 = vmor %vm1266, %vm1267
        %v1269 = vsel %vm1268, %v1261, %v1265
        %v1270 = vand.u32 2147483647, %v1246
        %vm1271 = vcmp.eq.f32.partialorder %v1270, 8.507059e+37
        %v1272 = vand.u32 %v1246, 2147483648
        %v1273 = vor.u32 1.1754944e-38, %v1272
        %v1274 = vsel %vm1271, %v1273, %v1269
        %v1275 = vmul.f32 %v1230, %v1260
        %v1276 = vmul.f32 %v1232, %v1274
        %v1277 = vsub.f32 1.0, %v421
        %v1278 = vsub.f32 1.0, %v422
        %v1279 = vsel %vm1212, %v1277, 0.0
        %v1280 = vrot.slane %v1279, 4
        %v1281 = vadd.f32 %v1279, %v1280
        %v1282 = vrot.slane %v1281, 2
        %v1283 = vadd.f32 %v1281, %v1282
        %v1284 = vrot.slane %v1283, 1
        %v1285 = vadd.f32 %v1283, %v1284
        %v1286 = vsel %vm1212, %v1278, 0.0
        %v1287 = vrot.slane %v1286, 4
        %v1288 = vadd.f32 %v1286, %v1287
        %v1289 = vrot.slane %v1288, 2
        %v1290 = vadd.f32 %v1288, %v1289
        %v1291 = vrot.slane %v1290, 1
        %v1292 = vadd.f32 %v1290, %v1291
        %v1293 = vmul.f32 %v1275, %v1277
        %v1294 = vmul.f32 %v1276, %v1278
        %v1295 = vrcp.pop %v1285
        %v1296 = vmul.f32 %v1285, %v1295
        %v1297 = vsub.f32 1.0, %v1296
        %v1298 = vmul.f32 %v1295, %v1297
        %v1299 = vadd.f32 %v1295, %v1298
        %vm1300 = vweird.f32 %v1285
        %vm1301 = vweird.f32 %v1295
        %vm1302 = vmor %vm1300, %vm1301
        %v1303 = vsel %vm1302, %v1295, %v1299
        %v1304 = vand.u32 2147483647, %v1285
        %vm1305 = vcmp.eq.f32.partialorder %v1304, 8.507059e+37
        %v1306 = vand.u32 %v1285, 2147483648
        %v1307 = vor.u32 1.1754944e-38, %v1306
        %v1308 = vsel %vm1305, %v1307, %v1303
        %v1309 = vrcp.pop %v1292
        %v1310 = vmul.f32 %v1292, %v1309
        %v1311 = vsub.f32 1.0, %v1310
        %v1312 = vmul.f32 %v1309, %v1311
        %v1313 = vadd.f32 %v1309, %v1312
        %vm1314 = vweird.f32 %v1292
        %vm1315 = vweird.f32 %v1309
        %vm1316 = vmor %vm1314, %vm1315
        %v1317 = vsel %vm1316, %v1309, %v1313
        %v1318 = vand.u32 2147483647, %v1292
        %vm1319 = vcmp.eq.f32.partialorder %v1318, 8.507059e+37
        %v1320 = vand.u32 %v1292, 2147483648
        %v1321 = vor.u32 1.1754944e-38, %v1320
        %v1322 = vsel %vm1319, %v1321, %v1317
        %v1323 = vmul.f32 %v1293, %v1308
        %v1324 = vmul.f32 %v1294, %v1322
        %1326 = vset.pattern.permute.xlu0 0
        %1327 = vperm.xlu0 %1326, %v1323
        %v1328 = vpop.permute.xlu0 %1327
        %1331 = vset.pattern.permute.xlu0 0
        %1332 = vperm.xlu0 %1331, %v1324
        %v1333 = vpop.permute.xlu0 %1332
        %v1335 = vmul.f32 %v415, %v1328
        %v1336 = vmul.f32 %v416, %v1333
        %v1337 = vsel %vm439, %v1335, 0.0
        %v1338 = vrot.slane %v1337, 4
        %v1339 = vadd.f32 %v1337, %v1338
        %v1340 = vrot.slane %v1339, 2
        %v1341 = vadd.f32 %v1339, %v1340
        %v1342 = vrot.slane %v1341, 1
        %v1343 = vadd.f32 %v1341, %v1342
        %v1344 = vsel %vm439, %v1336, 0.0
        %v1345 = vrot.slane %v1344, 4
        %v1346 = vadd.f32 %v1344, %v1345
        %v1347 = vrot.slane %v1346, 2
        %v1348 = vadd.f32 %v1346, %v1347
        %v1349 = vrot.slane %v1348, 1
        %v1350 = vadd.f32 %v1348, %v1349
        %vm1353 = vcmask 1041409
        %v1354 = vsel %vm1353, %v1350, %v1343
        %vm1356 = vcmask 254976
        %1357 = vst.msk [vmem:[%s376] sm:$0x3] %vm1356, %v1354
        %s1358 = sand.u32 %s225, 1
        %s1359 = scalar_lea.sflag [#allocation3], %s1358
        %s1360 = sand.u32 %s225, 1
        %s1361 = smul.addr %s1360, 2
        %s1362 = scalar_lea.vmem [#allocation2], %s1361
        // Predicated region
        $region49: #{tpu_custom_call.1} parent=47 // pred_check
          %p1363 = pneg %p235
        $region50: #{tpu_custom_call.1} parent=47 // pred_check_branch
          %1365 = sbr.rel (%p1363) target = $region52
        $region51: #{tpu_custom_call.1} parent=47 // pred_region
          %1367 = vsyncadd %s1359, 0
          %s1368 = sadd.s32 %s26, %s25
          %s1369 = smul.addr %s1368, 2
          %s1370 = scalar_lea.hbm %s7, %s1369
          %s1372 = sshll.u32 %s1362, 4
          %s1373 = int_to_ptr.vmem [resolvable:$true] %s1372
          %s1374 = sshll.u32 %s1370, 4
          %s1375 = int_to_ptr.hbm [resolvable:$true] %s1374
          %1377 = dma.vmem_to_hbm [thread:$0]  %s1373, 32, %s1375, %s1359
        $region52: #{tpu_custom_call.1} parent=47 // pred_fallthru
          _
      $region48: #{tpu_custom_call.1} parent=5 // pred_fallthru
        _
      %p1378 = scmp.le.s32.totalorder 2, %s16
      // Predicated region
      $region53: #{tpu_custom_call.1} parent=5 // pred_check
        %p1379 = pneg %p1378
      $region54: #{tpu_custom_call.1} parent=5 // pred_check_branch
        %1381 = sbr.rel (%p1379) target = $region56
      $region55: #{tpu_custom_call.1} parent=5 // pred_region
        %s1382 = ssub.s32 %s16, 2
        // Predicated region
        $region57: #{tpu_custom_call.1} parent=55 // pred_check
          %p1383 = pneg %p241
        $region58: #{tpu_custom_call.1} parent=55 // pred_check_branch
          %1385 = sbr.rel (%p1383) target = $region60
        $region59: #{tpu_custom_call.1} parent=55 // pred_region
          %s1386 = sand.u32 %s226, 1
          %s1387 = scalar_lea.sflag [#allocation3], %s1386
          %s1388 = sand.u32 %s226, 1
          %s1389 = smul.addr %s1388, 2
          %s1390 = scalar_lea.vmem [#allocation2], %s1389
          %1392 = dma.done %s1387, 32
        $region60: #{tpu_custom_call.1} parent=55 // pred_fallthru
          _
      $region56: #{tpu_custom_call.1} parent=5 // pred_fallthru
        _
    $region6: #{tpu_custom_call.1} parent=1 // loop_footer
      %s20 = sadd.s32 1, %s16
    $region7: #{tpu_custom_call.1} parent=1 // loop_footer_branch
      %15 = sbr.rel target = $region3
    $region8: #{tpu_custom_call.1} parent=1 // loop_exit
      _
    %1393 = vsyncpa [#allocation3], 1
    %s1394 = scalar_lea.sflag [#allocation3], 1
    %1395 = vsyncpa %s1394, 1

</llo_original>
